<compile_context>
chip_gen: v7x
topology: tpu7x:2x2x1
jax: 0.10.0
libtpu: 0.0.40
codegen_flags: <defaults>
</compile_context>

<pallas_src>
import functools

import jax
import jax.numpy as jnp
from jax import lax
from jax.experimental import pallas as pl
from jax.experimental.pallas import tpu as pltpu

HIDDEN = 128          # hidden_dim (hardcoded 128 in the MLP archi dicts)
RAW_IN_SCALAR = 6     # self.raw_in_scalar
SLOT = 32             # fixed per-graph node slot (QM9 max atom count is 29)
NEG = -1e9            # finite "-inf" sentinel for padded rows / empty graph slots


def _layer_norm(x, gamma, beta, eps=1e-5):
    """Single-pass LayerNorm: E[x] and E[x^2] computed together (one fewer pass)."""
    mean = jnp.mean(x, axis=-1, keepdims=True)
    mean_sq = jnp.mean(x * x, axis=-1, keepdims=True)
    var = jnp.maximum(mean_sq - mean * mean, 0.0)   # clamp: cancellation on pad rows
    return (x - mean) * lax.rsqrt(var + eps) * gamma + beta


def qm9_kernel(fm_ref,
               w_emb_ref, b_emb_ref,
               w_n1_ref, b_n1_ref, g_n_ref, be_n_ref,
               w_n2_ref, b_n2_ref,
               w_g1_ref, b_g1_ref, g_g_ref, be_g_ref,
               w_g2_ref, b_g2_ref,
               out_ref):
    gt = out_ref.shape[-1]                 # graphs in this tile
    tn = fm_ref.shape[0]                   # node rows in this tile (gt * SLOT)
    slot = tn // gt

    fm = fm_ref[...]                       # [TN, 7] f32 (6 features + validity col)

    # scalar_embedding: Linear(6 -> H) as 6 unrolled VPU broadcast-FMAs.
    # (the reference's f[:, 5] /= 9.0 is folded into row 5 of w_emb in the wrapper)
    h = fm[:, 0:1] * w_emb_ref[0, :] + b_emb_ref[...]
    for k in range(1, RAW_IN_SCALAR):
        h = h + fm[:, k:k + 1] * w_emb_ref[k, :]

    # TODO(synk): GBlock (SO3EquivariantAttenRes + NormBias) layers omitted --
    # smp_modules source unavailable; scalar features pass through unchanged.

    # node_mapping scalar MLP: Linear -> LN -> ReLU -> Linear (bf16 MXU, f32 acc/LN)
    h1 = jnp.dot(h.astype(jnp.bfloat16), w_n1_ref[...],
                 preferred_element_type=jnp.float32) + b_n1_ref[...]
    h1 = _layer_norm(h1, g_n_ref[...], be_n_ref[...])
    h1 = jnp.maximum(h1, 0.0)
    node_out = jnp.dot(h1.astype(jnp.bfloat16), w_n2_ref[...],
                       preferred_element_type=jnp.float32) + b_n2_ref[...]

    # residual: node_mapping(features) + res_drop(features)  (dropout = identity, eval)
    feat = node_out + h                                          # [TN, H]

    # Per-graph max pooling: graphs occupy fixed SLOT-row slots -> one reshape + max.
    # Padded rows carry NEG in the mask column and never win the max.
    mask = fm[:, RAW_IN_SCALAR:RAW_IN_SCALAR + 1]                # [TN, 1]: 0 / NEG
    pooled = jnp.max((feat + mask).reshape(gt, slot, feat.shape[-1]), axis=1)  # [Gt, H]

    # graph_mapping MLP: Linear -> LN -> ReLU -> Linear(128 -> 1)
    g1 = jnp.dot(pooled.astype(jnp.bfloat16), w_g1_ref[...],
                 preferred_element_type=jnp.float32) + b_g1_ref[...]
    g1 = _layer_norm(g1, g_g_ref[...], be_g_ref[...])
    g1 = jnp.maximum(g1, 0.0)

    # Final Linear(128 -> 1) as an NT-form dot producing a lane-dense [1, Gt] row
    # (w_g2 is replicated to 8 rows in the wrapper so M is a full sublane tile).
    out8 = lax.dot_general(w_g2_ref[...], g1, (((1,), (1,)), ((), ())),
                           preferred_element_type=jnp.float32)    # [8, Gt]
    out_ref[...] = (out8[0:1, :] + b_g2_ref[...]).reshape(out_ref.shape)


def _round_up(x, m):
    return ((x + m - 1) // m) * m


def _resident(shape):
    nd = len(shape)
    return pl.BlockSpec(shape, lambda i, _nd=nd: (0,) * _nd)


def init_params(key, hidden=HIDDEN):
    """Deterministic lecun-normal weights, zero biases, unit LN scales."""
    ks = jax.random.split(key, 6)

    def lecun(k, fan_in, fan_out):
        return (jax.random.normal(k, (fan_in, fan_out), jnp.float32)
                / jnp.sqrt(jnp.float32(fan_in)))

    return {
        "w_emb": lecun(ks[0], RAW_IN_SCALAR, hidden),
        "b_emb": jnp.zeros((1, hidden), jnp.float32),
        # node_mapping MLP (H -> 128 -> H)
        "w_n1": lecun(ks[1], hidden, 128),
        "b_n1": jnp.zeros((1, 128), jnp.float32),
        "g_n": jnp.ones((1, 128), jnp.float32),
        "be_n": jnp.zeros((1, 128), jnp.float32),
        "w_n2": lecun(ks[2], 128, hidden),
        "b_n2": jnp.zeros((1, hidden), jnp.float32),
        # graph_mapping MLP (H -> 128 -> 1)
        "w_g1": lecun(ks[3], hidden, 128),
        "b_g1": jnp.zeros((1, 128), jnp.float32),
        "g_g": jnp.ones((1, 128), jnp.float32),
        "be_g": jnp.zeros((1, 128), jnp.float32),
        "w_g2": lecun(ks[4], 128, 1),
        "b_g2": jnp.zeros((1, 1), jnp.float32),
    }


@functools.partial(jax.jit, static_argnames=("num_graphs", "tile_nodes"))
def qm9_forward(f, graph_id, params, *, num_graphs, tile_nodes=2048):
    """f: [N, 6, 1] node scalar features; graph_id: [N] sorted/contiguous membership."""
    f2d = f[..., 0].astype(jnp.float32)                          # [N, 6]
    n = f2d.shape[0]
    gi = graph_id.astype(jnp.int32)

    # Graph-tile geometry: Gt graphs x SLOT nodes per grid step (Gt multiple of 8).
    gt = min(max(tile_nodes // SLOT, 8), _round_up(num_graphs, 8))
    g_pad = _round_up(num_graphs, gt)
    tn = gt * SLOT
    num_tiles = g_pad // gt
    m = g_pad * SLOT

    # Scatter every node into its graph's fixed 32-row slot (graph ids are sorted
    # and contiguous, as produced by DGL graph batching).  Rows that would be out
    # of range (graph with > SLOT nodes, or graph_id >= num_graphs) map OOB and
    # are safely dropped by the scatter -- no unchecked in-kernel writes.
    counts = jax.ops.segment_sum(jnp.ones_like(gi), gi, num_segments=num_graphs)
    starts = jnp.concatenate([jnp.zeros((1,), counts.dtype),
                              jnp.cumsum(counts)[:-1]])
    pos = jnp.arange(n, dtype=jnp.int32) - starts[gi]
    dest = jnp.where(pos < SLOT, gi * SLOT + pos, m)

    f_slot = jnp.zeros((m, RAW_IN_SCALAR), jnp.float32).at[dest].set(f2d)
    valid = jnp.full((m, 1), NEG, jnp.float32).at[dest].set(0.0)
    fm = jnp.concatenate([f_slot, valid], axis=1)                # [M, 7]

    # Fold the reference's f[:, 5] /= 9.0 into the (linear) embedding weight.
    w_emb = params["w_emb"].at[5, :].multiply(1.0 / 9.0)

    bf16 = jnp.bfloat16
    weights = (
        w_emb, params["b_emb"],
        params["w_n1"].astype(bf16), params["b_n1"],
        params["g_n"], params["be_n"],
        params["w_n2"].astype(bf16), params["b_n2"],
        params["w_g1"].astype(bf16), params["b_g1"],
        params["g_g"], params["be_g"],
        jnp.tile(params["w_g2"].T, (8, 1)), params["b_g2"],      # w_g2 as a [8,128] slab
    )

    in_specs = ([pl.BlockSpec((tn, RAW_IN_SCALAR + 1), lambda i: (i, 0))]
                + [_resident(w.shape) for w in weights])

    out = pl.pallas_call(
        qm9_kernel,
        grid=(num_tiles,),
        in_specs=in_specs,
        out_specs=pl.BlockSpec((1, 1, gt), lambda i: (i, 0, 0)),
        out_shape=jax.ShapeDtypeStruct((num_tiles, 1, gt), jnp.float32),
        compiler_params=pltpu.CompilerParams(
            dimension_semantics=("parallel",)),
    )(fm, *weights)

    return out.reshape(g_pad)[:num_graphs, None]                 # [G, 1]


def qm9_reference(f, graph_id, params, *, num_graphs):
    """Pure-JAX f32 reference of the same forward (for tolerance check)."""
    f2d = f[..., 0].astype(jnp.float32)
    f2d = f2d.at[:, 5].divide(9.0)

    def ln(x, g, b, eps=1e-5):
        mu = jnp.mean(x, -1, keepdims=True)
        var = jnp.mean((x - mu) ** 2, -1, keepdims=True)
        return (x - mu) * lax.rsqrt(var + eps) * g + b

    h = f2d @ params["w_emb"] + params["b_emb"]
    h1 = jnp.maximum(ln(h @ params["w_n1"] + params["b_n1"],
                        params["g_n"], params["be_n"]), 0.0)
    feat = h1 @ params["w_n2"] + params["b_n2"] + h
    pooled = jax.ops.segment_max(feat, graph_id, num_segments=num_graphs)
    g1 = jnp.maximum(ln(pooled @ params["w_g1"] + params["b_g1"],
                        params["g_g"], params["be_g"]), 0.0)
    return g1 @ params["w_g2"] + params["b_g2"]


if __name__ == "__main__":
    key = jax.random.PRNGKey(0)
    k_f, k_x, k_p = jax.random.split(key, 3)

    num_graphs = 2
    nodes_per_graph = 8
    n_nodes = num_graphs * nodes_per_graph                       # 16 nodes total

    # G.ndata['f']: [N, 6, 1] scalar node features; G.ndata['x']: [N, 3] positions.
    f = jax.random.normal(k_f, (n_nodes, RAW_IN_SCALAR, 1), jnp.float32)
    x = jax.random.normal(k_x, (n_nodes, 3), jnp.float32)        # unused (see TODO)
    graph_id = jnp.repeat(jnp.arange(num_graphs, dtype=jnp.int32),
                          nodes_per_graph)                       # [N]

    params = init_params(k_p)

    out = qm9_forward(f, graph_id, params, num_graphs=num_graphs)
    out = jax.block_until_ready(out)
    ref = qm9_reference(f, graph_id, params, num_graphs=num_graphs)

    assert out.shape == (num_graphs, 1)
    assert bool(jnp.all(jnp.isfinite(out)))
    assert bool(jnp.allclose(out, ref, atol=5e-2, rtol=5e-2))    # bf16 MXU tolerance
    print("KERNEL_OK")
</pallas_src>

<mosaic_0001>
module attributes {stable_mosaic.version = 11 : i64} {
  func.func private @main(%arg0: i32) attributes {dimension_semantics = [#tpu.dimension_semantics<core_parallel>], iteration_bounds = array<i64: 2>, tpu.core_type = #tpu.core_type<sc_scalar_subcore>, window_params = []} {
    return
  }
}

module attributes {stable_mosaic.version = 11 : i64} {
  func.func private @main(%arg0: i32) attributes {dimension_semantics = [#tpu.dimension_semantics<core_parallel>], iteration_bounds = array<i64: 2>, tpu.core_type = #tpu.core_type<sc_scalar_subcore>, window_params = []} {
    return
  }
}

module attributes {stable_mosaic.version = 11 : i64} {
  func.func @qm9_kernel(%arg0: i32, %arg1: memref<256x7xf32, #tpu.memory_space<vmem>>, %arg2: memref<6x128xf32, #tpu.memory_space<vmem>>, %arg3: memref<1x128xf32, #tpu.memory_space<vmem>>, %arg4: memref<128x128xbf16, #tpu.memory_space<vmem>>, %arg5: memref<1x128xf32, #tpu.memory_space<vmem>>, %arg6: memref<1x128xf32, #tpu.memory_space<vmem>>, %arg7: memref<1x128xf32, #tpu.memory_space<vmem>>, %arg8: memref<128x128xbf16, #tpu.memory_space<vmem>>, %arg9: memref<1x128xf32, #tpu.memory_space<vmem>>, %arg10: memref<128x128xbf16, #tpu.memory_space<vmem>>, %arg11: memref<1x128xf32, #tpu.memory_space<vmem>>, %arg12: memref<1x128xf32, #tpu.memory_space<vmem>>, %arg13: memref<1x128xf32, #tpu.memory_space<vmem>>, %arg14: memref<8x128xf32, #tpu.memory_space<vmem>>, %arg15: memref<1x1xf32, #tpu.memory_space<vmem>>, %arg16: memref<1x1x8xf32, #tpu.memory_space<vmem>>) attributes {dimension_semantics = [#tpu.dimension_semantics<parallel>], iteration_bounds = array<i64: 1>, scalar_prefetch = 0 : i64, scratch_operands = 0 : i64, tpu.core_type = #tpu.core_type<tc>, window_params = [{transform_indices = @transform_0, window_bounds = array<i64: 256, 7>}, {pipeline_mode = #tpu.pipeline_mode<synchronous>, transform_indices = @transform_1, window_bounds = array<i64: 6, 128>}, {pipeline_mode = #tpu.pipeline_mode<synchronous>, transform_indices = @transform_2, window_bounds = array<i64: 1, 128>}, {pipeline_mode = #tpu.pipeline_mode<synchronous>, transform_indices = @transform_3, window_bounds = array<i64: 128, 128>}, {pipeline_mode = #tpu.pipeline_mode<synchronous>, transform_indices = @transform_4, window_bounds = array<i64: 1, 128>}, {pipeline_mode = #tpu.pipeline_mode<synchronous>, transform_indices = @transform_5, window_bounds = array<i64: 1, 128>}, {pipeline_mode = #tpu.pipeline_mode<synchronous>, transform_indices = @transform_6, window_bounds = array<i64: 1, 128>}, {pipeline_mode = #tpu.pipeline_mode<synchronous>, transform_indices = @transform_7, window_bounds = array<i64: 128, 128>}, {pipeline_mode = #tpu.pipeline_mode<synchronous>, transform_indices = @transform_8, window_bounds = array<i64: 1, 128>}, {pipeline_mode = #tpu.pipeline_mode<synchronous>, transform_indices = @transform_9, window_bounds = array<i64: 128, 128>}, {pipeline_mode = #tpu.pipeline_mode<synchronous>, transform_indices = @transform_10, window_bounds = array<i64: 1, 128>}, {pipeline_mode = #tpu.pipeline_mode<synchronous>, transform_indices = @transform_11, window_bounds = array<i64: 1, 128>}, {pipeline_mode = #tpu.pipeline_mode<synchronous>, transform_indices = @transform_12, window_bounds = array<i64: 1, 128>}, {pipeline_mode = #tpu.pipeline_mode<synchronous>, transform_indices = @transform_13, window_bounds = array<i64: 8, 128>}, {pipeline_mode = #tpu.pipeline_mode<synchronous>, transform_indices = @transform_14, window_bounds = array<i64: 1, 1>}, {transform_indices = @transform_15, window_bounds = array<i64: 1, 1, 8>}]} {
    %c0 = arith.constant 0 : index
    %c0_0 = arith.constant 0 : index
    %0 = vector.load %arg1[%c0, %c0_0] : memref<256x7xf32, #tpu.memory_space<vmem>>, vector<256x7xf32>
    %1 = vector.extract_strided_slice %0 {offsets = [0, 0], sizes = [256, 1], strides = [1, 1]} : vector<256x7xf32> to vector<256x1xf32>
    %c0_1 = arith.constant 0 : index
    %c0_2 = arith.constant 0 : index
    %2 = vector.load %arg2[%c0_1, %c0_2] : memref<6x128xf32, #tpu.memory_space<vmem>>, vector<1x128xf32>
    %3 = vector.shape_cast %2 : vector<1x128xf32> to vector<128xf32>
    %4 = vector.shape_cast %3 : vector<128xf32> to vector<1x128xf32>
    %5 = vector.broadcast %1 : vector<256x1xf32> to vector<256x128xf32>
    %6 = vector.broadcast %4 : vector<1x128xf32> to vector<256x128xf32>
    %7 = arith.mulf %5, %6 : vector<256x128xf32>
    %c0_3 = arith.constant 0 : index
    %c0_4 = arith.constant 0 : index
    %8 = vector.load %arg3[%c0_3, %c0_4] : memref<1x128xf32, #tpu.memory_space<vmem>>, vector<1x128xf32>
    %9 = vector.broadcast %8 : vector<1x128xf32> to vector<256x128xf32>
    %10 = arith.addf %7, %9 : vector<256x128xf32>
    %11 = vector.extract_strided_slice %0 {offsets = [0, 1], sizes = [256, 1], strides = [1, 1]} : vector<256x7xf32> to vector<256x1xf32>
    %c1 = arith.constant 1 : index
    %c0_5 = arith.constant 0 : index
    %12 = vector.load %arg2[%c1, %c0_5] : memref<6x128xf32, #tpu.memory_space<vmem>>, vector<1x128xf32>
    %13 = vector.shape_cast %12 : vector<1x128xf32> to vector<128xf32>
    %14 = vector.shape_cast %13 : vector<128xf32> to vector<1x128xf32>
    %15 = vector.broadcast %11 : vector<256x1xf32> to vector<256x128xf32>
    %16 = vector.broadcast %14 : vector<1x128xf32> to vector<256x128xf32>
    %17 = arith.mulf %15, %16 : vector<256x128xf32>
    %18 = arith.addf %10, %17 : vector<256x128xf32>
    %19 = vector.extract_strided_slice %0 {offsets = [0, 2], sizes = [256, 1], strides = [1, 1]} : vector<256x7xf32> to vector<256x1xf32>
    %c2 = arith.constant 2 : index
    %c0_6 = arith.constant 0 : index
    %20 = vector.load %arg2[%c2, %c0_6] : memref<6x128xf32, #tpu.memory_space<vmem>>, vector<1x128xf32>
    %21 = vector.shape_cast %20 : vector<1x128xf32> to vector<128xf32>
    %22 = vector.shape_cast %21 : vector<128xf32> to vector<1x128xf32>
    %23 = vector.broadcast %19 : vector<256x1xf32> to vector<256x128xf32>
    %24 = vector.broadcast %22 : vector<1x128xf32> to vector<256x128xf32>
    %25 = arith.mulf %23, %24 : vector<256x128xf32>
    %26 = arith.addf %18, %25 : vector<256x128xf32>
    %27 = vector.extract_strided_slice %0 {offsets = [0, 3], sizes = [256, 1], strides = [1, 1]} : vector<256x7xf32> to vector<256x1xf32>
    %c3 = arith.constant 3 : index
    %c0_7 = arith.constant 0 : index
    %28 = vector.load %arg2[%c3, %c0_7] : memref<6x128xf32, #tpu.memory_space<vmem>>, vector<1x128xf32>
    %29 = vector.shape_cast %28 : vector<1x128xf32> to vector<128xf32>
    %30 = vector.shape_cast %29 : vector<128xf32> to vector<1x128xf32>
    %31 = vector.broadcast %27 : vector<256x1xf32> to vector<256x128xf32>
    %32 = vector.broadcast %30 : vector<1x128xf32> to vector<256x128xf32>
    %33 = arith.mulf %31, %32 : vector<256x128xf32>
    %34 = arith.addf %26, %33 : vector<256x128xf32>
    %35 = vector.extract_strided_slice %0 {offsets = [0, 4], sizes = [256, 1], strides = [1, 1]} : vector<256x7xf32> to vector<256x1xf32>
    %c4 = arith.constant 4 : index
    %c0_8 = arith.constant 0 : index
    %36 = vector.load %arg2[%c4, %c0_8] : memref<6x128xf32, #tpu.memory_space<vmem>>, vector<1x128xf32>
    %37 = vector.shape_cast %36 : vector<1x128xf32> to vector<128xf32>
    %38 = vector.shape_cast %37 : vector<128xf32> to vector<1x128xf32>
    %39 = vector.broadcast %35 : vector<256x1xf32> to vector<256x128xf32>
    %40 = vector.broadcast %38 : vector<1x128xf32> to vector<256x128xf32>
    %41 = arith.mulf %39, %40 : vector<256x128xf32>
    %42 = arith.addf %34, %41 : vector<256x128xf32>
    %43 = vector.extract_strided_slice %0 {offsets = [0, 5], sizes = [256, 1], strides = [1, 1]} : vector<256x7xf32> to vector<256x1xf32>
    %c5 = arith.constant 5 : index
    %c0_9 = arith.constant 0 : index
    %44 = vector.load %arg2[%c5, %c0_9] : memref<6x128xf32, #tpu.memory_space<vmem>>, vector<1x128xf32>
    %45 = vector.shape_cast %44 : vector<1x128xf32> to vector<128xf32>
    %46 = vector.shape_cast %45 : vector<128xf32> to vector<1x128xf32>
    %47 = vector.broadcast %43 : vector<256x1xf32> to vector<256x128xf32>
    %48 = vector.broadcast %46 : vector<1x128xf32> to vector<256x128xf32>
    %49 = arith.mulf %47, %48 : vector<256x128xf32>
    %50 = arith.addf %42, %49 : vector<256x128xf32>
    %51 = arith.truncf %50 : vector<256x128xf32> to vector<256x128xbf16>
    %c0_10 = arith.constant 0 : index
    %c0_11 = arith.constant 0 : index
    %52 = vector.load %arg4[%c0_10, %c0_11] : memref<128x128xbf16, #tpu.memory_space<vmem>>, vector<128x128xbf16>
    %cst = arith.constant dense<0.000000e+00> : vector<256x128xf32>
    %53 = tpu.matmul %51, %52, %cst {dimension_numbers = #tpu.dot_dimension_numbers<[1], [0], [0], [1], [0, 0, 1, 1], [], []>} : vector<256x128xbf16>, vector<128x128xbf16>, vector<256x128xf32> -> vector<256x128xf32>
    %c0_12 = arith.constant 0 : index
    %c0_13 = arith.constant 0 : index
    %54 = vector.load %arg5[%c0_12, %c0_13] : memref<1x128xf32, #tpu.memory_space<vmem>>, vector<1x128xf32>
    %55 = vector.broadcast %54 : vector<1x128xf32> to vector<256x128xf32>
    %56 = arith.addf %53, %55 : vector<256x128xf32>
    %c0_14 = arith.constant 0 : index
    %c0_15 = arith.constant 0 : index
    %57 = vector.load %arg6[%c0_14, %c0_15] : memref<1x128xf32, #tpu.memory_space<vmem>>, vector<1x128xf32>
    %c0_16 = arith.constant 0 : index
    %c0_17 = arith.constant 0 : index
    %58 = vector.load %arg7[%c0_16, %c0_17] : memref<1x128xf32, #tpu.memory_space<vmem>>, vector<1x128xf32>
    %cst_18 = arith.constant dense<0.000000e+00> : vector<256xf32>
    %59 = vector.multi_reduction <add>, %56, %cst_18 [1] : vector<256x128xf32> to vector<256xf32>
    %60 = vector.shape_cast %59 : vector<256xf32> to vector<256x1xf32>
    %cst_19 = arith.constant 1.280000e+02 : f32
    %61 = vector.broadcast %cst_19 : f32 to vector<256x1xf32>
    %62 = arith.divf %60, %61 : vector<256x1xf32>
    %63 = arith.mulf %56, %56 : vector<256x128xf32>
    %cst_20 = arith.constant dense<0.000000e+00> : vector<256xf32>
    %64 = vector.multi_reduction <add>, %63, %cst_20 [1] : vector<256x128xf32> to vector<256xf32>
    %65 = vector.shape_cast %64 : vector<256xf32> to vector<256x1xf32>
    %cst_21 = arith.constant 1.280000e+02 : f32
    %66 = vector.broadcast %cst_21 : f32 to vector<256x1xf32>
    %67 = arith.divf %65, %66 : vector<256x1xf32>
    %68 = arith.mulf %62, %62 : vector<256x1xf32>
    %69 = arith.subf %67, %68 : vector<256x1xf32>
    %cst_22 = arith.constant 0.000000e+00 : f32
    %70 = vector.broadcast %cst_22 : f32 to vector<256x1xf32>
    %71 = arith.maximumf %69, %70 : vector<256x1xf32>
    %72 = vector.broadcast %62 : vector<256x1xf32> to vector<256x128xf32>
    %73 = arith.subf %56, %72 : vector<256x128xf32>
    %cst_23 = arith.constant 9.99999974E-6 : f32
    %74 = vector.broadcast %cst_23 : f32 to vector<256x1xf32>
    %75 = arith.addf %71, %74 : vector<256x1xf32>
    %76 = math.rsqrt %75 : vector<256x1xf32>
    %77 = vector.broadcast %76 : vector<256x1xf32> to vector<256x128xf32>
    %78 = arith.mulf %73, %77 : vector<256x128xf32>
    %79 = vector.broadcast %57 : vector<1x128xf32> to vector<256x128xf32>
    %80 = arith.mulf %78, %79 : vector<256x128xf32>
    %81 = vector.broadcast %58 : vector<1x128xf32> to vector<256x128xf32>
    %82 = arith.addf %80, %81 : vector<256x128xf32>
    %cst_24 = arith.constant 0.000000e+00 : f32
    %83 = vector.broadcast %cst_24 : f32 to vector<256x128xf32>
    %84 = arith.maximumf %82, %83 : vector<256x128xf32>
    %85 = arith.truncf %84 : vector<256x128xf32> to vector<256x128xbf16>
    %c0_25 = arith.constant 0 : index
    %c0_26 = arith.constant 0 : index
    %86 = vector.load %arg8[%c0_25, %c0_26] : memref<128x128xbf16, #tpu.memory_space<vmem>>, vector<128x128xbf16>
    %cst_27 = arith.constant dense<0.000000e+00> : vector<256x128xf32>
    %87 = tpu.matmul %85, %86, %cst_27 {dimension_numbers = #tpu.dot_dimension_numbers<[1], [0], [0], [1], [0, 0, 1, 1], [], []>} : vector<256x128xbf16>, vector<128x128xbf16>, vector<256x128xf32> -> vector<256x128xf32>
    %c0_28 = arith.constant 0 : index
    %c0_29 = arith.constant 0 : index
    %88 = vector.load %arg9[%c0_28, %c0_29] : memref<1x128xf32, #tpu.memory_space<vmem>>, vector<1x128xf32>
    %89 = vector.broadcast %88 : vector<1x128xf32> to vector<256x128xf32>
    %90 = arith.addf %87, %89 : vector<256x128xf32>
    %91 = arith.addf %90, %50 : vector<256x128xf32>
    %92 = vector.extract_strided_slice %0 {offsets = [0, 6], sizes = [256, 1], strides = [1, 1]} : vector<256x7xf32> to vector<256x1xf32>
    %93 = vector.broadcast %92 : vector<256x1xf32> to vector<256x128xf32>
    %94 = arith.addf %91, %93 : vector<256x128xf32>
    %95 = vector.shape_cast %94 : vector<256x128xf32> to vector<8x32x128xf32>
    %cst_30 = arith.constant dense<0xFF800000> : vector<8x128xf32>
    %96 = vector.multi_reduction <maximumf>, %95, %cst_30 [1] : vector<8x32x128xf32> to vector<8x128xf32>
    %97 = arith.truncf %96 : vector<8x128xf32> to vector<8x128xbf16>
    %c0_31 = arith.constant 0 : index
    %c0_32 = arith.constant 0 : index
    %98 = vector.load %arg10[%c0_31, %c0_32] : memref<128x128xbf16, #tpu.memory_space<vmem>>, vector<128x128xbf16>
    %cst_33 = arith.constant dense<0.000000e+00> : vector<8x128xf32>
    %99 = tpu.matmul %97, %98, %cst_33 {dimension_numbers = #tpu.dot_dimension_numbers<[1], [0], [0], [1], [0, 0, 1, 1], [], []>} : vector<8x128xbf16>, vector<128x128xbf16>, vector<8x128xf32> -> vector<8x128xf32>
    %c0_34 = arith.constant 0 : index
    %c0_35 = arith.constant 0 : index
    %100 = vector.load %arg11[%c0_34, %c0_35] : memref<1x128xf32, #tpu.memory_space<vmem>>, vector<1x128xf32>
    %101 = vector.broadcast %100 : vector<1x128xf32> to vector<8x128xf32>
    %102 = arith.addf %99, %101 : vector<8x128xf32>
    %c0_36 = arith.constant 0 : index
    %c0_37 = arith.constant 0 : index
    %103 = vector.load %arg12[%c0_36, %c0_37] : memref<1x128xf32, #tpu.memory_space<vmem>>, vector<1x128xf32>
    %c0_38 = arith.constant 0 : index
    %c0_39 = arith.constant 0 : index
    %104 = vector.load %arg13[%c0_38, %c0_39] : memref<1x128xf32, #tpu.memory_space<vmem>>, vector<1x128xf32>
    %cst_40 = arith.constant dense<0.000000e+00> : vector<8xf32>
    %105 = vector.multi_reduction <add>, %102, %cst_40 [1] : vector<8x128xf32> to vector<8xf32>
    %106 = vector.shape_cast %105 : vector<8xf32> to vector<8x1xf32>
    %cst_41 = arith.constant 1.280000e+02 : f32
    %107 = vector.broadcast %cst_41 : f32 to vector<8x1xf32>
    %108 = arith.divf %106, %107 : vector<8x1xf32>
    %109 = arith.mulf %102, %102 : vector<8x128xf32>
    %cst_42 = arith.constant dense<0.000000e+00> : vector<8xf32>
    %110 = vector.multi_reduction <add>, %109, %cst_42 [1] : vector<8x128xf32> to vector<8xf32>
    %111 = vector.shape_cast %110 : vector<8xf32> to vector<8x1xf32>
    %cst_43 = arith.constant 1.280000e+02 : f32
    %112 = vector.broadcast %cst_43 : f32 to vector<8x1xf32>
    %113 = arith.divf %111, %112 : vector<8x1xf32>
    %114 = arith.mulf %108, %108 : vector<8x1xf32>
    %115 = arith.subf %113, %114 : vector<8x1xf32>
    %cst_44 = arith.constant 0.000000e+00 : f32
    %116 = vector.broadcast %cst_44 : f32 to vector<8x1xf32>
    %117 = arith.maximumf %115, %116 : vector<8x1xf32>
    %118 = vector.broadcast %108 : vector<8x1xf32> to vector<8x128xf32>
    %119 = arith.subf %102, %118 : vector<8x128xf32>
    %cst_45 = arith.constant 9.99999974E-6 : f32
    %120 = vector.broadcast %cst_45 : f32 to vector<8x1xf32>
    %121 = arith.addf %117, %120 : vector<8x1xf32>
    %122 = math.rsqrt %121 : vector<8x1xf32>
    %123 = vector.broadcast %122 : vector<8x1xf32> to vector<8x128xf32>
    %124 = arith.mulf %119, %123 : vector<8x128xf32>
    %125 = vector.broadcast %103 : vector<1x128xf32> to vector<8x128xf32>
    %126 = arith.mulf %124, %125 : vector<8x128xf32>
    %127 = vector.broadcast %104 : vector<1x128xf32> to vector<8x128xf32>
    %128 = arith.addf %126, %127 : vector<8x128xf32>
    %cst_46 = arith.constant 0.000000e+00 : f32
    %129 = vector.broadcast %cst_46 : f32 to vector<8x128xf32>
    %130 = arith.maximumf %128, %129 : vector<8x128xf32>
    %c0_47 = arith.constant 0 : index
    %c0_48 = arith.constant 0 : index
    %131 = vector.load %arg14[%c0_47, %c0_48] : memref<8x128xf32, #tpu.memory_space<vmem>>, vector<8x128xf32>
    %cst_49 = arith.constant dense<0.000000e+00> : vector<8x8xf32>
    %132 = tpu.matmul %131, %130, %cst_49 {dimension_numbers = #tpu.dot_dimension_numbers<[1], [1], [0], [0], [0, 0, 1, 0], [], []>} : vector<8x128xf32>, vector<8x128xf32>, vector<8x8xf32> -> vector<8x8xf32>
    %133 = vector.extract_strided_slice %132 {offsets = [0, 0], sizes = [1, 8], strides = [1, 1]} : vector<8x8xf32> to vector<1x8xf32>
    %c0_50 = arith.constant 0 : index
    %c0_51 = arith.constant 0 : index
    %134 = vector.load %arg15[%c0_50, %c0_51] : memref<1x1xf32, #tpu.memory_space<vmem>>, vector<1x1xf32>
    %135 = vector.broadcast %134 : vector<1x1xf32> to vector<1x8xf32>
    %136 = arith.addf %133, %135 : vector<1x8xf32>
    %137 = vector.shape_cast %136 : vector<1x8xf32> to vector<1x1x8xf32>
    %c0_52 = arith.constant 0 : index
    %c0_53 = arith.constant 0 : index
    %c0_54 = arith.constant 0 : index
    %138 = vector.load %arg16[%c0_52, %c0_53, %c0_54] : memref<1x1x8xf32, #tpu.memory_space<vmem>>, vector<1x1x8xf32>
    tpu.vector_store %arg16[%c0_52, %c0_53, %c0_54], %137 {strides = array<i32>} : memref<1x1x8xf32, #tpu.memory_space<vmem>>, vector<1x1x8xf32>,
    return
  }
  func.func @transform_0(%arg0: i32) -> (i32, i32) {
    %c0_i32 = arith.constant 0 : i32
    %c0_i32_0 = arith.constant 0 : i32
    return %arg0, %c0_i32 : i32, i32
  }
  func.func @transform_1(%arg0: i32) -> (i32, i32) {
    %c0_i32 = arith.constant 0 : i32
    %c0_i32_0 = arith.constant 0 : i32
    %c0_i32_1 = arith.constant 0 : i32
    return %c0_i32, %c0_i32_0 : i32, i32
  }
  func.func @transform_2(%arg0: i32) -> (i32, i32) {
    %c0_i32 = arith.constant 0 : i32
    %c0_i32_0 = arith.constant 0 : i32
    %c0_i32_1 = arith.constant 0 : i32
    return %c0_i32, %c0_i32_0 : i32, i32
  }
  func.func @transform_3(%arg0: i32) -> (i32, i32) {
    %c0_i32 = arith.constant 0 : i32
    %c0_i32_0 = arith.constant 0 : i32
    %c0_i32_1 = arith.constant 0 : i32
    return %c0_i32, %c0_i32_0 : i32, i32
  }
  func.func @transform_4(%arg0: i32) -> (i32, i32) {
    %c0_i32 = arith.constant 0 : i32
    %c0_i32_0 = arith.constant 0 : i32
    %c0_i32_1 = arith.constant 0 : i32
    return %c0_i32, %c0_i32_0 : i32, i32
  }
  func.func @transform_5(%arg0: i32) -> (i32, i32) {
    %c0_i32 = arith.constant 0 : i32
    %c0_i32_0 = arith.constant 0 : i32
    %c0_i32_1 = arith.constant 0 : i32
    return %c0_i32, %c0_i32_0 : i32, i32
  }
  func.func @transform_6(%arg0: i32) -> (i32, i32) {
    %c0_i32 = arith.constant 0 : i32
    %c0_i32_0 = arith.constant 0 : i32
    %c0_i32_1 = arith.constant 0 : i32
    return %c0_i32, %c0_i32_0 : i32, i32
  }
  func.func @transform_7(%arg0: i32) -> (i32, i32) {
    %c0_i32 = arith.constant 0 : i32
    %c0_i32_0 = arith.constant 0 : i32
    %c0_i32_1 = arith.constant 0 : i32
    return %c0_i32, %c0_i32_0 : i32, i32
  }
  func.func @transform_8(%arg0: i32) -> (i32, i32) {
    %c0_i32 = arith.constant 0 : i32
    %c0_i32_0 = arith.constant 0 : i32
    %c0_i32_1 = arith.constant 0 : i32
    return %c0_i32, %c0_i32_0 : i32, i32
  }
  func.func @transform_9(%arg0: i32) -> (i32, i32) {
    %c0_i32 = arith.constant 0 : i32
    %c0_i32_0 = arith.constant 0 : i32
    %c0_i32_1 = arith.constant 0 : i32
    return %c0_i32, %c0_i32_0 : i32, i32
  }
  func.func @transform_10(%arg0: i32) -> (i32, i32) {
    %c0_i32 = arith.constant 0 : i32
    %c0_i32_0 = arith.constant 0 : i32
    %c0_i32_1 = arith.constant 0 : i32
    return %c0_i32, %c0_i32_0 : i32, i32
  }
  func.func @transform_11(%arg0: i32) -> (i32, i32) {
    %c0_i32 = arith.constant 0 : i32
    %c0_i32_0 = arith.constant 0 : i32
    %c0_i32_1 = arith.constant 0 : i32
    return %c0_i32, %c0_i32_0 : i32, i32
  }
  func.func @transform_12(%arg0: i32) -> (i32, i32) {
    %c0_i32 = arith.constant 0 : i32
    %c0_i32_0 = arith.constant 0 : i32
    %c0_i32_1 = arith.constant 0 : i32
    return %c0_i32, %c0_i32_0 : i32, i32
  }
  func.func @transform_13(%arg0: i32) -> (i32, i32) {
    %c0_i32 = arith.constant 0 : i32
    %c0_i32_0 = arith.constant 0 : i32
    %c0_i32_1 = arith.constant 0 : i32
    return %c0_i32, %c0_i32_0 : i32, i32
  }
  func.func @transform_14(%arg0: i32) -> (i32, i32) {
    %c0_i32 = arith.constant 0 : i32
    %c0_i32_0 = arith.constant 0 : i32
    %c0_i32_1 = arith.constant 0 : i32
    return %c0_i32, %c0_i32_0 : i32, i32
  }
  func.func @transform_15(%arg0: i32) -> (i32, i32, i32) {
    %c0_i32 = arith.constant 0 : i32
    %c0_i32_0 = arith.constant 0 : i32
    %c0_i32_1 = arith.constant 0 : i32
    return %arg0, %c0_i32, %c0_i32_0 : i32, i32, i32
  }
}

</mosaic_0001>

<llo_original>
// kernel: qm9_forward.1
$region0: #{qm9_forward.1}
  #allocation0 [shape = 'u32[]', space=smem, size = 0x4, offset = 0x4, fixed_abs, tag = 'smem constant byte address 0x4 - core index']
  #allocation1 [shape = 'u32[144,128]{1,0:T(1,128)}', space=vmem, size = 0x12000, scoped, tag = 'internal scratch']
  #allocation2 [shape = 'f32[1,1]{1,0:T(1,128)S(1)}', space=vmem, size = 0x200, scoped, tag = 'scoped memory for qm9_forward.1']
  %s0 = inlined_call_operand.vmem [shape: f32[256,7], index: 0, kind: input, shape index: {}]
  %s1 = inlined_call_operand.vmem [shape: f32[6,128], index: 1, kind: input, shape index: {}]
  %s2 = inlined_call_operand.vmem [shape: f32[1,128], index: 2, kind: input, shape index: {}]
  %s3 = inlined_call_operand.vmem [shape: bf16[128,128], index: 3, kind: input, shape index: {}]
  %s4 = inlined_call_operand.vmem [shape: f32[1,128], index: 4, kind: input, shape index: {}]
  %s5 = inlined_call_operand.vmem [shape: f32[1,128], index: 5, kind: input, shape index: {}]
  %s6 = inlined_call_operand.vmem [shape: f32[1,128], index: 6, kind: input, shape index: {}]
  %s7 = inlined_call_operand.vmem [shape: bf16[128,128], index: 7, kind: input, shape index: {}]
  %s8 = inlined_call_operand.vmem [shape: f32[1,128], index: 8, kind: input, shape index: {}]
  %s9 = inlined_call_operand.vmem [shape: bf16[128,128], index: 9, kind: input, shape index: {}]
  %s10 = inlined_call_operand.vmem [shape: f32[1,128], index: 10, kind: input, shape index: {}]
  %s11 = inlined_call_operand.vmem [shape: f32[1,128], index: 11, kind: input, shape index: {}]
  %s12 = inlined_call_operand.vmem [shape: f32[1,128], index: 12, kind: input, shape index: {}]
  %s13 = inlined_call_operand.vmem [shape: f32[8,128], index: 13, kind: input, shape index: {}]
  %s14 = inlined_call_operand.<no memory space> [shape: f32[1,1], index: 14, kind: input, shape index: {}]
  %s15 = inlined_call_operand.vmem [shape: f32[1,1,8], index: 15, kind: output, shape index: {}]
  %s16 = sld [smem:[#allocation0]]
  $region70: #{qm9_forward.1} parent=0
    _
  %s18 = ssub.s32 1, %s16
  %s19 = scalar_select 0, %s18, %s16
  %v20 = vstv %s14
  %21 = vst [vmem:[#allocation2] sm:$0x1] %v20
  // Predicated region
  $region2: #{qm9_forward.1} parent=0 // pred_check
    _
  $region3: #{qm9_forward.1} parent=0 // pred_check_branch
    %23 = sbr.rel (0) target = $region5
  $region4: #{qm9_forward.1} parent=0 // pred_region
    _
  $region5: #{qm9_forward.1} parent=0 // pred_fallthru
    _
  // Predicated region
  $region6: #{qm9_forward.1} parent=0 // pred_check
    _
  $region7: #{qm9_forward.1} parent=0 // pred_check_branch
    %25 = sbr.rel (0) target = $region9
  $region8: #{qm9_forward.1} parent=0 // pred_region
    _
  $region9: #{qm9_forward.1} parent=0 // pred_fallthru
    _
  // Predicated region
  $region10: #{qm9_forward.1} parent=0 // pred_check
    _
  $region11: #{qm9_forward.1} parent=0 // pred_check_branch
    %27 = sbr.rel (0) target = $region13
  $region12: #{qm9_forward.1} parent=0 // pred_region
    _
  $region13: #{qm9_forward.1} parent=0 // pred_fallthru
    _
  // Predicated region
  $region14: #{qm9_forward.1} parent=0 // pred_check
    _
  $region15: #{qm9_forward.1} parent=0 // pred_check_branch
    %29 = sbr.rel (0) target = $region17
  $region16: #{qm9_forward.1} parent=0 // pred_region
    _
  $region17: #{qm9_forward.1} parent=0 // pred_fallthru
    _
  // Predicated region
  $region18: #{qm9_forward.1} parent=0 // pred_check
    _
  $region19: #{qm9_forward.1} parent=0 // pred_check_branch
    %31 = sbr.rel (0) target = $region21
  $region20: #{qm9_forward.1} parent=0 // pred_region
    _
  $region21: #{qm9_forward.1} parent=0 // pred_fallthru
    _
  // Predicated region
  $region22: #{qm9_forward.1} parent=0 // pred_check
    _
  $region23: #{qm9_forward.1} parent=0 // pred_check_branch
    %33 = sbr.rel (0) target = $region25
  $region24: #{qm9_forward.1} parent=0 // pred_region
    _
  $region25: #{qm9_forward.1} parent=0 // pred_fallthru
    _
  // Predicated region
  $region26: #{qm9_forward.1} parent=0 // pred_check
    _
  $region27: #{qm9_forward.1} parent=0 // pred_check_branch
    %35 = sbr.rel (0) target = $region29
  $region28: #{qm9_forward.1} parent=0 // pred_region
    _
  $region29: #{qm9_forward.1} parent=0 // pred_fallthru
    _
  // Predicated region
  $region30: #{qm9_forward.1} parent=0 // pred_check
    _
  $region31: #{qm9_forward.1} parent=0 // pred_check_branch
    %37 = sbr.rel (0) target = $region33
  $region32: #{qm9_forward.1} parent=0 // pred_region
    _
  $region33: #{qm9_forward.1} parent=0 // pred_fallthru
    _
  // Predicated region
  $region34: #{qm9_forward.1} parent=0 // pred_check
    _
  $region35: #{qm9_forward.1} parent=0 // pred_check_branch
    %39 = sbr.rel (0) target = $region37
  $region36: #{qm9_forward.1} parent=0 // pred_region
    _
  $region37: #{qm9_forward.1} parent=0 // pred_fallthru
    _
  // Predicated region
  $region38: #{qm9_forward.1} parent=0 // pred_check
    _
  $region39: #{qm9_forward.1} parent=0 // pred_check_branch
    %41 = sbr.rel (0) target = $region41
  $region40: #{qm9_forward.1} parent=0 // pred_region
    _
  $region41: #{qm9_forward.1} parent=0 // pred_fallthru
    _
  // Predicated region
  $region42: #{qm9_forward.1} parent=0 // pred_check
    _
  $region43: #{qm9_forward.1} parent=0 // pred_check_branch
    %43 = sbr.rel (0) target = $region45
  $region44: #{qm9_forward.1} parent=0 // pred_region
    _
  $region45: #{qm9_forward.1} parent=0 // pred_fallthru
    _
  // Predicated region
  $region46: #{qm9_forward.1} parent=0 // pred_check
    _
  $region47: #{qm9_forward.1} parent=0 // pred_check_branch
    %45 = sbr.rel (0) target = $region49
  $region48: #{qm9_forward.1} parent=0 // pred_region
    _
  $region49: #{qm9_forward.1} parent=0 // pred_fallthru
    _
  // Predicated region
  $region50: #{qm9_forward.1} parent=0 // pred_check
    _
  $region51: #{qm9_forward.1} parent=0 // pred_check_branch
    %47 = sbr.rel (0) target = $region53
  $region52: #{qm9_forward.1} parent=0 // pred_region
    _
  $region53: #{qm9_forward.1} parent=0 // pred_fallthru
    _
  // Predicated region
  $region54: #{qm9_forward.1} parent=0 // pred_check
    _
  $region55: #{qm9_forward.1} parent=0 // pred_check_branch
    %49 = sbr.rel (0) target = $region57
  $region56: #{qm9_forward.1} parent=0 // pred_region
    _
  $region57: #{qm9_forward.1} parent=0 // pred_fallthru
    _
  // Predicated region
  $region58: #{qm9_forward.1} parent=0 // pred_check
    _
  $region59: #{qm9_forward.1} parent=0 // pred_check_branch
    %51 = sbr.rel (0) target = $region61
  $region60: #{qm9_forward.1} parent=0 // pred_region
    _
  $region61: #{qm9_forward.1} parent=0 // pred_fallthru
    _
  %v53 = vld [vmem:[%s0] sm:$0xff]
  %v54 = vld [vmem:[%s0 + $0x8] sm:$0xff]
  %v55 = vld [vmem:[%s0 + $0x10] sm:$0xff]
  %v56 = vld [vmem:[%s0 + $0x18] sm:$0xff]
  %v57 = vld [vmem:[%s0 + $0x20] sm:$0xff]
  %v58 = vld [vmem:[%s0 + $0x28] sm:$0xff]
  %v59 = vld [vmem:[%s0 + $0x30] sm:$0xff]
  %v60 = vld [vmem:[%s0 + $0x38] sm:$0xff]
  %v61 = vld [vmem:[%s0 + $0x40] sm:$0xff]
  %v62 = vld [vmem:[%s0 + $0x48] sm:$0xff]
  %v63 = vld [vmem:[%s0 + $0x50] sm:$0xff]
  %v64 = vld [vmem:[%s0 + $0x58] sm:$0xff]
  %v65 = vld [vmem:[%s0 + $0x60] sm:$0xff]
  %v66 = vld [vmem:[%s0 + $0x68] sm:$0xff]
  %v67 = vld [vmem:[%s0 + $0x70] sm:$0xff]
  %v68 = vld [vmem:[%s0 + $0x78] sm:$0xff]
  %v69 = vld [vmem:[%s0 + $0x80] sm:$0xff]
  %v70 = vld [vmem:[%s0 + $0x88] sm:$0xff]
  %v71 = vld [vmem:[%s0 + $0x90] sm:$0xff]
  %v72 = vld [vmem:[%s0 + $0x98] sm:$0xff]
  %v73 = vld [vmem:[%s0 + $0xa0] sm:$0xff]
  %v74 = vld [vmem:[%s0 + $0xa8] sm:$0xff]
  %v75 = vld [vmem:[%s0 + $0xb0] sm:$0xff]
  %v76 = vld [vmem:[%s0 + $0xb8] sm:$0xff]
  %v77 = vld [vmem:[%s0 + $0xc0] sm:$0xff]
  %v78 = vld [vmem:[%s0 + $0xc8] sm:$0xff]
  %v79 = vld [vmem:[%s0 + $0xd0] sm:$0xff]
  %v80 = vld [vmem:[%s0 + $0xd8] sm:$0xff]
  %v81 = vld [vmem:[%s0 + $0xe0] sm:$0xff]
  %v82 = vld [vmem:[%s0 + $0xe8] sm:$0xff]
  %v83 = vld [vmem:[%s0 + $0xf0] sm:$0xff]
  %v84 = vld [vmem:[%s0 + $0xf8] sm:$0xff]
  %v85 = vld [vmem:[%s1] sm:$0x1]
  %87 = vset.pattern.permute.xlu0 0
  %88 = vperm.xlu0 %87, %v53
  %v89 = vpop.permute.xlu0 %88
  %92 = vset.pattern.permute.xlu0 0
  %93 = vperm.xlu0 %92, %v54
  %v94 = vpop.permute.xlu0 %93
  %97 = vset.pattern.permute.xlu0 0
  %98 = vperm.xlu0 %97, %v55
  %v99 = vpop.permute.xlu0 %98
  %102 = vset.pattern.permute.xlu0 0
  %103 = vperm.xlu0 %102, %v56
  %v104 = vpop.permute.xlu0 %103
  %107 = vset.pattern.permute.xlu0 0
  %108 = vperm.xlu0 %107, %v57
  %v109 = vpop.permute.xlu0 %108
  %112 = vset.pattern.permute.xlu0 0
  %113 = vperm.xlu0 %112, %v58
  %v114 = vpop.permute.xlu0 %113
  %117 = vset.pattern.permute.xlu0 0
  %118 = vperm.xlu0 %117, %v59
  %v119 = vpop.permute.xlu0 %118
  %122 = vset.pattern.permute.xlu0 0
  %123 = vperm.xlu0 %122, %v60
  %v124 = vpop.permute.xlu0 %123
  %127 = vset.pattern.permute.xlu0 0
  %128 = vperm.xlu0 %127, %v61
  %v129 = vpop.permute.xlu0 %128
  %132 = vset.pattern.permute.xlu0 0
  %133 = vperm.xlu0 %132, %v62
  %v134 = vpop.permute.xlu0 %133
  %137 = vset.pattern.permute.xlu0 0
  %138 = vperm.xlu0 %137, %v63
  %v139 = vpop.permute.xlu0 %138
  %142 = vset.pattern.permute.xlu0 0
  %143 = vperm.xlu0 %142, %v64
  %v144 = vpop.permute.xlu0 %143
  %147 = vset.pattern.permute.xlu0 0
  %148 = vperm.xlu0 %147, %v65
  %v149 = vpop.permute.xlu0 %148
  %152 = vset.pattern.permute.xlu0 0
  %153 = vperm.xlu0 %152, %v66
  %v154 = vpop.permute.xlu0 %153
  %157 = vset.pattern.permute.xlu0 0
  %158 = vperm.xlu0 %157, %v67
  %v159 = vpop.permute.xlu0 %158
  %162 = vset.pattern.permute.xlu0 0
  %163 = vperm.xlu0 %162, %v68
  %v164 = vpop.permute.xlu0 %163
  %167 = vset.pattern.permute.xlu0 0
  %168 = vperm.xlu0 %167, %v69
  %v169 = vpop.permute.xlu0 %168
  %172 = vset.pattern.permute.xlu0 0
  %173 = vperm.xlu0 %172, %v70
  %v174 = vpop.permute.xlu0 %173
  %177 = vset.pattern.permute.xlu0 0
  %178 = vperm.xlu0 %177, %v71
  %v179 = vpop.permute.xlu0 %178
  %182 = vset.pattern.permute.xlu0 0
  %183 = vperm.xlu0 %182, %v72
  %v184 = vpop.permute.xlu0 %183
  %187 = vset.pattern.permute.xlu0 0
  %188 = vperm.xlu0 %187, %v73
  %v189 = vpop.permute.xlu0 %188
  %192 = vset.pattern.permute.xlu0 0
  %193 = vperm.xlu0 %192, %v74
  %v194 = vpop.permute.xlu0 %193
  %197 = vset.pattern.permute.xlu0 0
  %198 = vperm.xlu0 %197, %v75
  %v199 = vpop.permute.xlu0 %198
  %202 = vset.pattern.permute.xlu0 0
  %203 = vperm.xlu0 %202, %v76
  %v204 = vpop.permute.xlu0 %203
  %207 = vset.pattern.permute.xlu0 0
  %208 = vperm.xlu0 %207, %v77
  %v209 = vpop.permute.xlu0 %208
  %212 = vset.pattern.permute.xlu0 0
  %213 = vperm.xlu0 %212, %v78
  %v214 = vpop.permute.xlu0 %213
  %217 = vset.pattern.permute.xlu0 0
  %218 = vperm.xlu0 %217, %v79
  %v219 = vpop.permute.xlu0 %218
  %222 = vset.pattern.permute.xlu0 0
  %223 = vperm.xlu0 %222, %v80
  %v224 = vpop.permute.xlu0 %223
  %227 = vset.pattern.permute.xlu0 0
  %228 = vperm.xlu0 %227, %v81
  %v229 = vpop.permute.xlu0 %228
  %232 = vset.pattern.permute.xlu0 0
  %233 = vperm.xlu0 %232, %v82
  %v234 = vpop.permute.xlu0 %233
  %237 = vset.pattern.permute.xlu0 0
  %238 = vperm.xlu0 %237, %v83
  %v239 = vpop.permute.xlu0 %238
  %242 = vset.pattern.permute.xlu0 0
  %243 = vperm.xlu0 %242, %v84
  %v244 = vpop.permute.xlu0 %243
  %v246 = vlaneseq
  %v247 = vshrl.u32 %v246, 7
  %v248 = vsub.s32 0, %v247
  %v249 = vrot.slane %v85, %v248
  %v250 = vmul.f32 %v89, %v249
  %v251 = vmul.f32 %v94, %v249
  %v252 = vmul.f32 %v99, %v249
  %v253 = vmul.f32 %v104, %v249
  %v254 = vmul.f32 %v109, %v249
  %v255 = vmul.f32 %v114, %v249
  %v256 = vmul.f32 %v119, %v249
  %v257 = vmul.f32 %v124, %v249
  %v258 = vmul.f32 %v129, %v249
  %v259 = vmul.f32 %v134, %v249
  %v260 = vmul.f32 %v139, %v249
  %v261 = vmul.f32 %v144, %v249
  %v262 = vmul.f32 %v149, %v249
  %v263 = vmul.f32 %v154, %v249
  %v264 = vmul.f32 %v159, %v249
  %v265 = vmul.f32 %v164, %v249
  %v266 = vmul.f32 %v169, %v249
  %v267 = vmul.f32 %v174, %v249
  %v268 = vmul.f32 %v179, %v249
  %v269 = vmul.f32 %v184, %v249
  %v270 = vmul.f32 %v189, %v249
  %v271 = vmul.f32 %v194, %v249
  %v272 = vmul.f32 %v199, %v249
  %v273 = vmul.f32 %v204, %v249
  %v274 = vmul.f32 %v209, %v249
  %v275 = vmul.f32 %v214, %v249
  %v276 = vmul.f32 %v219, %v249
  %v277 = vmul.f32 %v224, %v249
  %v278 = vmul.f32 %v229, %v249
  %v279 = vmul.f32 %v234, %v249
  %v280 = vmul.f32 %v239, %v249
  %v281 = vmul.f32 %v244, %v249
  %v282 = vld [vmem:[%s2] sm:$0x1]
  %v284 = vlaneseq
  %v285 = vshrl.u32 %v284, 7
  %v286 = vsub.s32 0, %v285
  %v287 = vrot.slane %v282, %v286
  %v289 = vadd.f32 %v250, %v287
  %v290 = vadd.f32 %v251, %v287
  %v291 = vadd.f32 %v252, %v287
  %v292 = vadd.f32 %v253, %v287
  %v293 = vadd.f32 %v254, %v287
  %v294 = vadd.f32 %v255, %v287
  %v295 = vadd.f32 %v256, %v287
  %v296 = vadd.f32 %v257, %v287
  %v297 = vadd.f32 %v258, %v287
  %v298 = vadd.f32 %v259, %v287
  %v299 = vadd.f32 %v260, %v287
  %v300 = vadd.f32 %v261, %v287
  %v301 = vadd.f32 %v262, %v287
  %v302 = vadd.f32 %v263, %v287
  %v303 = vadd.f32 %v264, %v287
  %v304 = vadd.f32 %v265, %v287
  %v305 = vadd.f32 %v266, %v287
  %v306 = vadd.f32 %v267, %v287
  %v307 = vadd.f32 %v268, %v287
  %v308 = vadd.f32 %v269, %v287
  %v309 = vadd.f32 %v270, %v287
  %v310 = vadd.f32 %v271, %v287
  %v311 = vadd.f32 %v272, %v287
  %v312 = vadd.f32 %v273, %v287
  %v313 = vadd.f32 %v274, %v287
  %v314 = vadd.f32 %v275, %v287
  %v315 = vadd.f32 %v276, %v287
  %v316 = vadd.f32 %v277, %v287
  %v317 = vadd.f32 %v278, %v287
  %v318 = vadd.f32 %v279, %v287
  %v319 = vadd.f32 %v280, %v287
  %v320 = vadd.f32 %v281, %v287
  %v321 = vld [vmem:[%s1 + $0x1] sm:$0x1]
  %322 = vset.pattern.permute.xlu0 1
  %323 = vperm.xlu0 %322, %v53
  %v324 = vpop.permute.xlu0 %323
  %326 = vset.pattern.permute.xlu0 1
  %327 = vperm.xlu0 %326, %v54
  %v328 = vpop.permute.xlu0 %327
  %330 = vset.pattern.permute.xlu0 1
  %331 = vperm.xlu0 %330, %v55
  %v332 = vpop.permute.xlu0 %331
  %334 = vset.pattern.permute.xlu0 1
  %335 = vperm.xlu0 %334, %v56
  %v336 = vpop.permute.xlu0 %335
  %338 = vset.pattern.permute.xlu0 1
  %339 = vperm.xlu0 %338, %v57
  %v340 = vpop.permute.xlu0 %339
  %342 = vset.pattern.permute.xlu0 1
  %343 = vperm.xlu0 %342, %v58
  %v344 = vpop.permute.xlu0 %343
  %346 = vset.pattern.permute.xlu0 1
  %347 = vperm.xlu0 %346, %v59
  %v348 = vpop.permute.xlu0 %347
  %350 = vset.pattern.permute.xlu0 1
  %351 = vperm.xlu0 %350, %v60
  %v352 = vpop.permute.xlu0 %351
  %354 = vset.pattern.permute.xlu0 1
  %355 = vperm.xlu0 %354, %v61
  %v356 = vpop.permute.xlu0 %355
  %358 = vset.pattern.permute.xlu0 1
  %359 = vperm.xlu0 %358, %v62
  %v360 = vpop.permute.xlu0 %359
  %362 = vset.pattern.permute.xlu0 1
  %363 = vperm.xlu0 %362, %v63
  %v364 = vpop.permute.xlu0 %363
  %366 = vset.pattern.permute.xlu0 1
  %367 = vperm.xlu0 %366, %v64
  %v368 = vpop.permute.xlu0 %367
  %370 = vset.pattern.permute.xlu0 1
  %371 = vperm.xlu0 %370, %v65
  %v372 = vpop.permute.xlu0 %371
  %374 = vset.pattern.permute.xlu0 1
  %375 = vperm.xlu0 %374, %v66
  %v376 = vpop.permute.xlu0 %375
  %378 = vset.pattern.permute.xlu0 1
  %379 = vperm.xlu0 %378, %v67
  %v380 = vpop.permute.xlu0 %379
  %382 = vset.pattern.permute.xlu0 1
  %383 = vperm.xlu0 %382, %v68
  %v384 = vpop.permute.xlu0 %383
  %386 = vset.pattern.permute.xlu0 1
  %387 = vperm.xlu0 %386, %v69
  %v388 = vpop.permute.xlu0 %387
  %390 = vset.pattern.permute.xlu0 1
  %391 = vperm.xlu0 %390, %v70
  %v392 = vpop.permute.xlu0 %391
  %394 = vset.pattern.permute.xlu0 1
  %395 = vperm.xlu0 %394, %v71
  %v396 = vpop.permute.xlu0 %395
  %398 = vset.pattern.permute.xlu0 1
  %399 = vperm.xlu0 %398, %v72
  %v400 = vpop.permute.xlu0 %399
  %402 = vset.pattern.permute.xlu0 1
  %403 = vperm.xlu0 %402, %v73
  %v404 = vpop.permute.xlu0 %403
  %406 = vset.pattern.permute.xlu0 1
  %407 = vperm.xlu0 %406, %v74
  %v408 = vpop.permute.xlu0 %407
  %410 = vset.pattern.permute.xlu0 1
  %411 = vperm.xlu0 %410, %v75
  %v412 = vpop.permute.xlu0 %411
  %414 = vset.pattern.permute.xlu0 1
  %415 = vperm.xlu0 %414, %v76
  %v416 = vpop.permute.xlu0 %415
  %418 = vset.pattern.permute.xlu0 1
  %419 = vperm.xlu0 %418, %v77
  %v420 = vpop.permute.xlu0 %419
  %422 = vset.pattern.permute.xlu0 1
  %423 = vperm.xlu0 %422, %v78
  %v424 = vpop.permute.xlu0 %423
  %426 = vset.pattern.permute.xlu0 1
  %427 = vperm.xlu0 %426, %v79
  %v428 = vpop.permute.xlu0 %427
  %430 = vset.pattern.permute.xlu0 1
  %431 = vperm.xlu0 %430, %v80
  %v432 = vpop.permute.xlu0 %431
  %434 = vset.pattern.permute.xlu0 1
  %435 = vperm.xlu0 %434, %v81
  %v436 = vpop.permute.xlu0 %435
  %438 = vset.pattern.permute.xlu0 1
  %439 = vperm.xlu0 %438, %v82
  %v440 = vpop.permute.xlu0 %439
  %442 = vset.pattern.permute.xlu0 1
  %443 = vperm.xlu0 %442, %v83
  %v444 = vpop.permute.xlu0 %443
  %446 = vset.pattern.permute.xlu0 1
  %447 = vperm.xlu0 %446, %v84
  %v448 = vpop.permute.xlu0 %447
  %v450 = vlaneseq
  %v451 = vshrl.u32 %v450, 7
  %v452 = vsub.s32 0, %v451
  %v453 = vrot.slane %v321, %v452
  %v454 = vmul.f32 %v324, %v453
  %v455 = vmul.f32 %v328, %v453
  %v456 = vmul.f32 %v332, %v453
  %v457 = vmul.f32 %v336, %v453
  %v458 = vmul.f32 %v340, %v453
  %v459 = vmul.f32 %v344, %v453
  %v460 = vmul.f32 %v348, %v453
  %v461 = vmul.f32 %v352, %v453
  %v462 = vmul.f32 %v356, %v453
  %v463 = vmul.f32 %v360, %v453
  %v464 = vmul.f32 %v364, %v453
  %v465 = vmul.f32 %v368, %v453
  %v466 = vmul.f32 %v372, %v453
  %v467 = vmul.f32 %v376, %v453
  %v468 = vmul.f32 %v380, %v453
  %v469 = vmul.f32 %v384, %v453
  %v470 = vmul.f32 %v388, %v453
  %v471 = vmul.f32 %v392, %v453
  %v472 = vmul.f32 %v396, %v453
  %v473 = vmul.f32 %v400, %v453
  %v474 = vmul.f32 %v404, %v453
  %v475 = vmul.f32 %v408, %v453
  %v476 = vmul.f32 %v412, %v453
  %v477 = vmul.f32 %v416, %v453
  %v478 = vmul.f32 %v420, %v453
  %v479 = vmul.f32 %v424, %v453
  %v480 = vmul.f32 %v428, %v453
  %v481 = vmul.f32 %v432, %v453
  %v482 = vmul.f32 %v436, %v453
  %v483 = vmul.f32 %v440, %v453
  %v484 = vmul.f32 %v444, %v453
  %v485 = vmul.f32 %v448, %v453
  %v486 = vadd.f32 %v289, %v454
  %v487 = vadd.f32 %v290, %v455
  %v488 = vadd.f32 %v291, %v456
  %v489 = vadd.f32 %v292, %v457
  %v490 = vadd.f32 %v293, %v458
  %v491 = vadd.f32 %v294, %v459
  %v492 = vadd.f32 %v295, %v460
  %v493 = vadd.f32 %v296, %v461
  %v494 = vadd.f32 %v297, %v462
  %v495 = vadd.f32 %v298, %v463
  %v496 = vadd.f32 %v299, %v464
  %v497 = vadd.f32 %v300, %v465
  %v498 = vadd.f32 %v301, %v466
  %v499 = vadd.f32 %v302, %v467
  %v500 = vadd.f32 %v303, %v468
  %v501 = vadd.f32 %v304, %v469
  %v502 = vadd.f32 %v305, %v470
  %v503 = vadd.f32 %v306, %v471
  %v504 = vadd.f32 %v307, %v472
  %v505 = vadd.f32 %v308, %v473
  %v506 = vadd.f32 %v309, %v474
  %v507 = vadd.f32 %v310, %v475
  %v508 = vadd.f32 %v311, %v476
  %v509 = vadd.f32 %v312, %v477
  %v510 = vadd.f32 %v313, %v478
  %v511 = vadd.f32 %v314, %v479
  %v512 = vadd.f32 %v315, %v480
  %v513 = vadd.f32 %v316, %v481
  %v514 = vadd.f32 %v317, %v482
  %v515 = vadd.f32 %v318, %v483
  %v516 = vadd.f32 %v319, %v484
  %v517 = vadd.f32 %v320, %v485
  %v518 = vld [vmem:[%s1 + $0x2] sm:$0x1]
  %519 = vset.pattern.permute.xlu0 2
  %520 = vperm.xlu0 %519, %v53
  %v521 = vpop.permute.xlu0 %520
  %523 = vset.pattern.permute.xlu0 2
  %524 = vperm.xlu0 %523, %v54
  %v525 = vpop.permute.xlu0 %524
  %527 = vset.pattern.permute.xlu0 2
  %528 = vperm.xlu0 %527, %v55
  %v529 = vpop.permute.xlu0 %528
  %531 = vset.pattern.permute.xlu0 2
  %532 = vperm.xlu0 %531, %v56
  %v533 = vpop.permute.xlu0 %532
  %535 = vset.pattern.permute.xlu0 2
  %536 = vperm.xlu0 %535, %v57
  %v537 = vpop.permute.xlu0 %536
  %539 = vset.pattern.permute.xlu0 2
  %540 = vperm.xlu0 %539, %v58
  %v541 = vpop.permute.xlu0 %540
  %543 = vset.pattern.permute.xlu0 2
  %544 = vperm.xlu0 %543, %v59
  %v545 = vpop.permute.xlu0 %544
  %547 = vset.pattern.permute.xlu0 2
  %548 = vperm.xlu0 %547, %v60
  %v549 = vpop.permute.xlu0 %548
  %551 = vset.pattern.permute.xlu0 2
  %552 = vperm.xlu0 %551, %v61
  %v553 = vpop.permute.xlu0 %552
  %555 = vset.pattern.permute.xlu0 2
  %556 = vperm.xlu0 %555, %v62
  %v557 = vpop.permute.xlu0 %556
  %559 = vset.pattern.permute.xlu0 2
  %560 = vperm.xlu0 %559, %v63
  %v561 = vpop.permute.xlu0 %560
  %563 = vset.pattern.permute.xlu0 2
  %564 = vperm.xlu0 %563, %v64
  %v565 = vpop.permute.xlu0 %564
  %567 = vset.pattern.permute.xlu0 2
  %568 = vperm.xlu0 %567, %v65
  %v569 = vpop.permute.xlu0 %568
  %571 = vset.pattern.permute.xlu0 2
  %572 = vperm.xlu0 %571, %v66
  %v573 = vpop.permute.xlu0 %572
  %575 = vset.pattern.permute.xlu0 2
  %576 = vperm.xlu0 %575, %v67
  %v577 = vpop.permute.xlu0 %576
  %579 = vset.pattern.permute.xlu0 2
  %580 = vperm.xlu0 %579, %v68
  %v581 = vpop.permute.xlu0 %580
  %583 = vset.pattern.permute.xlu0 2
  %584 = vperm.xlu0 %583, %v69
  %v585 = vpop.permute.xlu0 %584
  %587 = vset.pattern.permute.xlu0 2
  %588 = vperm.xlu0 %587, %v70
  %v589 = vpop.permute.xlu0 %588
  %591 = vset.pattern.permute.xlu0 2
  %592 = vperm.xlu0 %591, %v71
  %v593 = vpop.permute.xlu0 %592
  %595 = vset.pattern.permute.xlu0 2
  %596 = vperm.xlu0 %595, %v72
  %v597 = vpop.permute.xlu0 %596
  %599 = vset.pattern.permute.xlu0 2
  %600 = vperm.xlu0 %599, %v73
  %v601 = vpop.permute.xlu0 %600
  %603 = vset.pattern.permute.xlu0 2
  %604 = vperm.xlu0 %603, %v74
  %v605 = vpop.permute.xlu0 %604
  %607 = vset.pattern.permute.xlu0 2
  %608 = vperm.xlu0 %607, %v75
  %v609 = vpop.permute.xlu0 %608
  %611 = vset.pattern.permute.xlu0 2
  %612 = vperm.xlu0 %611, %v76
  %v613 = vpop.permute.xlu0 %612
  %615 = vset.pattern.permute.xlu0 2
  %616 = vperm.xlu0 %615, %v77
  %v617 = vpop.permute.xlu0 %616
  %619 = vset.pattern.permute.xlu0 2
  %620 = vperm.xlu0 %619, %v78
  %v621 = vpop.permute.xlu0 %620
  %623 = vset.pattern.permute.xlu0 2
  %624 = vperm.xlu0 %623, %v79
  %v625 = vpop.permute.xlu0 %624
  %627 = vset.pattern.permute.xlu0 2
  %628 = vperm.xlu0 %627, %v80
  %v629 = vpop.permute.xlu0 %628
  %631 = vset.pattern.permute.xlu0 2
  %632 = vperm.xlu0 %631, %v81
  %v633 = vpop.permute.xlu0 %632
  %635 = vset.pattern.permute.xlu0 2
  %636 = vperm.xlu0 %635, %v82
  %v637 = vpop.permute.xlu0 %636
  %639 = vset.pattern.permute.xlu0 2
  %640 = vperm.xlu0 %639, %v83
  %v641 = vpop.permute.xlu0 %640
  %643 = vset.pattern.permute.xlu0 2
  %644 = vperm.xlu0 %643, %v84
  %v645 = vpop.permute.xlu0 %644
  %v647 = vlaneseq
  %v648 = vshrl.u32 %v647, 7
  %v649 = vsub.s32 0, %v648
  %v650 = vrot.slane %v518, %v649
  %v651 = vmul.f32 %v521, %v650
  %v652 = vmul.f32 %v525, %v650
  %v653 = vmul.f32 %v529, %v650
  %v654 = vmul.f32 %v533, %v650
  %v655 = vmul.f32 %v537, %v650
  %v656 = vmul.f32 %v541, %v650
  %v657 = vmul.f32 %v545, %v650
  %v658 = vmul.f32 %v549, %v650
  %v659 = vmul.f32 %v553, %v650
  %v660 = vmul.f32 %v557, %v650
  %v661 = vmul.f32 %v561, %v650
  %v662 = vmul.f32 %v565, %v650
  %v663 = vmul.f32 %v569, %v650
  %v664 = vmul.f32 %v573, %v650
  %v665 = vmul.f32 %v577, %v650
  %v666 = vmul.f32 %v581, %v650
  %v667 = vmul.f32 %v585, %v650
  %v668 = vmul.f32 %v589, %v650
  %v669 = vmul.f32 %v593, %v650
  %v670 = vmul.f32 %v597, %v650
  %v671 = vmul.f32 %v601, %v650
  %v672 = vmul.f32 %v605, %v650
  %v673 = vmul.f32 %v609, %v650
  %v674 = vmul.f32 %v613, %v650
  %v675 = vmul.f32 %v617, %v650
  %v676 = vmul.f32 %v621, %v650
  %v677 = vmul.f32 %v625, %v650
  %v678 = vmul.f32 %v629, %v650
  %v679 = vmul.f32 %v633, %v650
  %v680 = vmul.f32 %v637, %v650
  %v681 = vmul.f32 %v641, %v650
  %v682 = vmul.f32 %v645, %v650
  %v683 = vadd.f32 %v486, %v651
  %v684 = vadd.f32 %v487, %v652
  %v685 = vadd.f32 %v488, %v653
  %v686 = vadd.f32 %v489, %v654
  %v687 = vadd.f32 %v490, %v655
  %v688 = vadd.f32 %v491, %v656
  %v689 = vadd.f32 %v492, %v657
  %v690 = vadd.f32 %v493, %v658
  %v691 = vadd.f32 %v494, %v659
  %v692 = vadd.f32 %v495, %v660
  %v693 = vadd.f32 %v496, %v661
  %v694 = vadd.f32 %v497, %v662
  %v695 = vadd.f32 %v498, %v663
  %v696 = vadd.f32 %v499, %v664
  %v697 = vadd.f32 %v500, %v665
  %v698 = vadd.f32 %v501, %v666
  %v699 = vadd.f32 %v502, %v667
  %v700 = vadd.f32 %v503, %v668
  %v701 = vadd.f32 %v504, %v669
  %v702 = vadd.f32 %v505, %v670
  %v703 = vadd.f32 %v506, %v671
  %v704 = vadd.f32 %v507, %v672
  %v705 = vadd.f32 %v508, %v673
  %v706 = vadd.f32 %v509, %v674
  %v707 = vadd.f32 %v510, %v675
  %v708 = vadd.f32 %v511, %v676
  %v709 = vadd.f32 %v512, %v677
  %v710 = vadd.f32 %v513, %v678
  %v711 = vadd.f32 %v514, %v679
  %v712 = vadd.f32 %v515, %v680
  %v713 = vadd.f32 %v516, %v681
  %v714 = vadd.f32 %v517, %v682
  %v715 = vld [vmem:[%s1 + $0x3] sm:$0x1]
  %716 = vset.pattern.permute.xlu0 3
  %717 = vperm.xlu0 %716, %v53
  %v718 = vpop.permute.xlu0 %717
  %720 = vset.pattern.permute.xlu0 3
  %721 = vperm.xlu0 %720, %v54
  %v722 = vpop.permute.xlu0 %721
  %724 = vset.pattern.permute.xlu0 3
  %725 = vperm.xlu0 %724, %v55
  %v726 = vpop.permute.xlu0 %725
  %728 = vset.pattern.permute.xlu0 3
  %729 = vperm.xlu0 %728, %v56
  %v730 = vpop.permute.xlu0 %729
  %732 = vset.pattern.permute.xlu0 3
  %733 = vperm.xlu0 %732, %v57
  %v734 = vpop.permute.xlu0 %733
  %736 = vset.pattern.permute.xlu0 3
  %737 = vperm.xlu0 %736, %v58
  %v738 = vpop.permute.xlu0 %737
  %740 = vset.pattern.permute.xlu0 3
  %741 = vperm.xlu0 %740, %v59
  %v742 = vpop.permute.xlu0 %741
  %744 = vset.pattern.permute.xlu0 3
  %745 = vperm.xlu0 %744, %v60
  %v746 = vpop.permute.xlu0 %745
  %748 = vset.pattern.permute.xlu0 3
  %749 = vperm.xlu0 %748, %v61
  %v750 = vpop.permute.xlu0 %749
  %752 = vset.pattern.permute.xlu0 3
  %753 = vperm.xlu0 %752, %v62
  %v754 = vpop.permute.xlu0 %753
  %756 = vset.pattern.permute.xlu0 3
  %757 = vperm.xlu0 %756, %v63
  %v758 = vpop.permute.xlu0 %757
  %760 = vset.pattern.permute.xlu0 3
  %761 = vperm.xlu0 %760, %v64
  %v762 = vpop.permute.xlu0 %761
  %764 = vset.pattern.permute.xlu0 3
  %765 = vperm.xlu0 %764, %v65
  %v766 = vpop.permute.xlu0 %765
  %768 = vset.pattern.permute.xlu0 3
  %769 = vperm.xlu0 %768, %v66
  %v770 = vpop.permute.xlu0 %769
  %772 = vset.pattern.permute.xlu0 3
  %773 = vperm.xlu0 %772, %v67
  %v774 = vpop.permute.xlu0 %773
  %776 = vset.pattern.permute.xlu0 3
  %777 = vperm.xlu0 %776, %v68
  %v778 = vpop.permute.xlu0 %777
  %780 = vset.pattern.permute.xlu0 3
  %781 = vperm.xlu0 %780, %v69
  %v782 = vpop.permute.xlu0 %781
  %784 = vset.pattern.permute.xlu0 3
  %785 = vperm.xlu0 %784, %v70
  %v786 = vpop.permute.xlu0 %785
  %788 = vset.pattern.permute.xlu0 3
  %789 = vperm.xlu0 %788, %v71
  %v790 = vpop.permute.xlu0 %789
  %792 = vset.pattern.permute.xlu0 3
  %793 = vperm.xlu0 %792, %v72
  %v794 = vpop.permute.xlu0 %793
  %796 = vset.pattern.permute.xlu0 3
  %797 = vperm.xlu0 %796, %v73
  %v798 = vpop.permute.xlu0 %797
  %800 = vset.pattern.permute.xlu0 3
  %801 = vperm.xlu0 %800, %v74
  %v802 = vpop.permute.xlu0 %801
  %804 = vset.pattern.permute.xlu0 3
  %805 = vperm.xlu0 %804, %v75
  %v806 = vpop.permute.xlu0 %805
  %808 = vset.pattern.permute.xlu0 3
  %809 = vperm.xlu0 %808, %v76
  %v810 = vpop.permute.xlu0 %809
  %812 = vset.pattern.permute.xlu0 3
  %813 = vperm.xlu0 %812, %v77
  %v814 = vpop.permute.xlu0 %813
  %816 = vset.pattern.permute.xlu0 3
  %817 = vperm.xlu0 %816, %v78
  %v818 = vpop.permute.xlu0 %817
  %820 = vset.pattern.permute.xlu0 3
  %821 = vperm.xlu0 %820, %v79
  %v822 = vpop.permute.xlu0 %821
  %824 = vset.pattern.permute.xlu0 3
  %825 = vperm.xlu0 %824, %v80
  %v826 = vpop.permute.xlu0 %825
  %828 = vset.pattern.permute.xlu0 3
  %829 = vperm.xlu0 %828, %v81
  %v830 = vpop.permute.xlu0 %829
  %832 = vset.pattern.permute.xlu0 3
  %833 = vperm.xlu0 %832, %v82
  %v834 = vpop.permute.xlu0 %833
  %836 = vset.pattern.permute.xlu0 3
  %837 = vperm.xlu0 %836, %v83
  %v838 = vpop.permute.xlu0 %837
  %840 = vset.pattern.permute.xlu0 3
  %841 = vperm.xlu0 %840, %v84
  %v842 = vpop.permute.xlu0 %841
  %v844 = vlaneseq
  %v845 = vshrl.u32 %v844, 7
  %v846 = vsub.s32 0, %v845
  %v847 = vrot.slane %v715, %v846
  %v848 = vmul.f32 %v718, %v847
  %v849 = vmul.f32 %v722, %v847
  %v850 = vmul.f32 %v726, %v847
  %v851 = vmul.f32 %v730, %v847
  %v852 = vmul.f32 %v734, %v847
  %v853 = vmul.f32 %v738, %v847
  %v854 = vmul.f32 %v742, %v847
  %v855 = vmul.f32 %v746, %v847
  %v856 = vmul.f32 %v750, %v847
  %v857 = vmul.f32 %v754, %v847
  %v858 = vmul.f32 %v758, %v847
  %v859 = vmul.f32 %v762, %v847
  %v860 = vmul.f32 %v766, %v847
  %v861 = vmul.f32 %v770, %v847
  %v862 = vmul.f32 %v774, %v847
  %v863 = vmul.f32 %v778, %v847
  %v864 = vmul.f32 %v782, %v847
  %v865 = vmul.f32 %v786, %v847
  %v866 = vmul.f32 %v790, %v847
  %v867 = vmul.f32 %v794, %v847
  %v868 = vmul.f32 %v798, %v847
  %v869 = vmul.f32 %v802, %v847
  %v870 = vmul.f32 %v806, %v847
  %v871 = vmul.f32 %v810, %v847
  %v872 = vmul.f32 %v814, %v847
  %v873 = vmul.f32 %v818, %v847
  %v874 = vmul.f32 %v822, %v847
  %v875 = vmul.f32 %v826, %v847
  %v876 = vmul.f32 %v830, %v847
  %v877 = vmul.f32 %v834, %v847
  %v878 = vmul.f32 %v838, %v847
  %v879 = vmul.f32 %v842, %v847
  %v880 = vadd.f32 %v683, %v848
  %v881 = vadd.f32 %v684, %v849
  %v882 = vadd.f32 %v685, %v850
  %v883 = vadd.f32 %v686, %v851
  %v884 = vadd.f32 %v687, %v852
  %v885 = vadd.f32 %v688, %v853
  %v886 = vadd.f32 %v689, %v854
  %v887 = vadd.f32 %v690, %v855
  %v888 = vadd.f32 %v691, %v856
  %v889 = vadd.f32 %v692, %v857
  %v890 = vadd.f32 %v693, %v858
  %v891 = vadd.f32 %v694, %v859
  %v892 = vadd.f32 %v695, %v860
  %v893 = vadd.f32 %v696, %v861
  %v894 = vadd.f32 %v697, %v862
  %v895 = vadd.f32 %v698, %v863
  %v896 = vadd.f32 %v699, %v864
  %v897 = vadd.f32 %v700, %v865
  %v898 = vadd.f32 %v701, %v866
  %v899 = vadd.f32 %v702, %v867
  %v900 = vadd.f32 %v703, %v868
  %v901 = vadd.f32 %v704, %v869
  %v902 = vadd.f32 %v705, %v870
  %v903 = vadd.f32 %v706, %v871
  %v904 = vadd.f32 %v707, %v872
  %v905 = vadd.f32 %v708, %v873
  %v906 = vadd.f32 %v709, %v874
  %v907 = vadd.f32 %v710, %v875
  %v908 = vadd.f32 %v711, %v876
  %v909 = vadd.f32 %v712, %v877
  %v910 = vadd.f32 %v713, %v878
  %v911 = vadd.f32 %v714, %v879
  %v912 = vld [vmem:[%s1 + $0x4] sm:$0x1]
  %913 = vset.pattern.permute.xlu0 4
  %914 = vperm.xlu0 %913, %v53
  %v915 = vpop.permute.xlu0 %914
  %917 = vset.pattern.permute.xlu0 4
  %918 = vperm.xlu0 %917, %v54
  %v919 = vpop.permute.xlu0 %918
  %921 = vset.pattern.permute.xlu0 4
  %922 = vperm.xlu0 %921, %v55
  %v923 = vpop.permute.xlu0 %922
  %925 = vset.pattern.permute.xlu0 4
  %926 = vperm.xlu0 %925, %v56
  %v927 = vpop.permute.xlu0 %926
  %929 = vset.pattern.permute.xlu0 4
  %930 = vperm.xlu0 %929, %v57
  %v931 = vpop.permute.xlu0 %930
  %933 = vset.pattern.permute.xlu0 4
  %934 = vperm.xlu0 %933, %v58
  %v935 = vpop.permute.xlu0 %934
  %937 = vset.pattern.permute.xlu0 4
  %938 = vperm.xlu0 %937, %v59
  %v939 = vpop.permute.xlu0 %938
  %941 = vset.pattern.permute.xlu0 4
  %942 = vperm.xlu0 %941, %v60
  %v943 = vpop.permute.xlu0 %942
  %945 = vset.pattern.permute.xlu0 4
  %946 = vperm.xlu0 %945, %v61
  %v947 = vpop.permute.xlu0 %946
  %949 = vset.pattern.permute.xlu0 4
  %950 = vperm.xlu0 %949, %v62
  %v951 = vpop.permute.xlu0 %950
  %953 = vset.pattern.permute.xlu0 4
  %954 = vperm.xlu0 %953, %v63
  %v955 = vpop.permute.xlu0 %954
  %957 = vset.pattern.permute.xlu0 4
  %958 = vperm.xlu0 %957, %v64
  %v959 = vpop.permute.xlu0 %958
  %961 = vset.pattern.permute.xlu0 4
  %962 = vperm.xlu0 %961, %v65
  %v963 = vpop.permute.xlu0 %962
  %965 = vset.pattern.permute.xlu0 4
  %966 = vperm.xlu0 %965, %v66
  %v967 = vpop.permute.xlu0 %966
  %969 = vset.pattern.permute.xlu0 4
  %970 = vperm.xlu0 %969, %v67
  %v971 = vpop.permute.xlu0 %970
  %973 = vset.pattern.permute.xlu0 4
  %974 = vperm.xlu0 %973, %v68
  %v975 = vpop.permute.xlu0 %974
  %977 = vset.pattern.permute.xlu0 4
  %978 = vperm.xlu0 %977, %v69
  %v979 = vpop.permute.xlu0 %978
  %981 = vset.pattern.permute.xlu0 4
  %982 = vperm.xlu0 %981, %v70
  %v983 = vpop.permute.xlu0 %982
  %985 = vset.pattern.permute.xlu0 4
  %986 = vperm.xlu0 %985, %v71
  %v987 = vpop.permute.xlu0 %986
  %989 = vset.pattern.permute.xlu0 4
  %990 = vperm.xlu0 %989, %v72
  %v991 = vpop.permute.xlu0 %990
  %993 = vset.pattern.permute.xlu0 4
  %994 = vperm.xlu0 %993, %v73
  %v995 = vpop.permute.xlu0 %994
  %997 = vset.pattern.permute.xlu0 4
  %998 = vperm.xlu0 %997, %v74
  %v999 = vpop.permute.xlu0 %998
  %1001 = vset.pattern.permute.xlu0 4
  %1002 = vperm.xlu0 %1001, %v75
  %v1003 = vpop.permute.xlu0 %1002
  %1005 = vset.pattern.permute.xlu0 4
  %1006 = vperm.xlu0 %1005, %v76
  %v1007 = vpop.permute.xlu0 %1006
  %1009 = vset.pattern.permute.xlu0 4
  %1010 = vperm.xlu0 %1009, %v77
  %v1011 = vpop.permute.xlu0 %1010
  %1013 = vset.pattern.permute.xlu0 4
  %1014 = vperm.xlu0 %1013, %v78
  %v1015 = vpop.permute.xlu0 %1014
  %1017 = vset.pattern.permute.xlu0 4
  %1018 = vperm.xlu0 %1017, %v79
  %v1019 = vpop.permute.xlu0 %1018
  %1021 = vset.pattern.permute.xlu0 4
  %1022 = vperm.xlu0 %1021, %v80
  %v1023 = vpop.permute.xlu0 %1022
  %1025 = vset.pattern.permute.xlu0 4
  %1026 = vperm.xlu0 %1025, %v81
  %v1027 = vpop.permute.xlu0 %1026
  %1029 = vset.pattern.permute.xlu0 4
  %1030 = vperm.xlu0 %1029, %v82
  %v1031 = vpop.permute.xlu0 %1030
  %1033 = vset.pattern.permute.xlu0 4
  %1034 = vperm.xlu0 %1033, %v83
  %v1035 = vpop.permute.xlu0 %1034
  %1037 = vset.pattern.permute.xlu0 4
  %1038 = vperm.xlu0 %1037, %v84
  %v1039 = vpop.permute.xlu0 %1038
  %v1041 = vlaneseq
  %v1042 = vshrl.u32 %v1041, 7
  %v1043 = vsub.s32 0, %v1042
  %v1044 = vrot.slane %v912, %v1043
  %v1045 = vmul.f32 %v915, %v1044
  %v1046 = vmul.f32 %v919, %v1044
  %v1047 = vmul.f32 %v923, %v1044
  %v1048 = vmul.f32 %v927, %v1044
  %v1049 = vmul.f32 %v931, %v1044
  %v1050 = vmul.f32 %v935, %v1044
  %v1051 = vmul.f32 %v939, %v1044
  %v1052 = vmul.f32 %v943, %v1044
  %v1053 = vmul.f32 %v947, %v1044
  %v1054 = vmul.f32 %v951, %v1044
  %v1055 = vmul.f32 %v955, %v1044
  %v1056 = vmul.f32 %v959, %v1044
  %v1057 = vmul.f32 %v963, %v1044
  %v1058 = vmul.f32 %v967, %v1044
  %v1059 = vmul.f32 %v971, %v1044
  %v1060 = vmul.f32 %v975, %v1044
  %v1061 = vmul.f32 %v979, %v1044
  %v1062 = vmul.f32 %v983, %v1044
  %v1063 = vmul.f32 %v987, %v1044
  %v1064 = vmul.f32 %v991, %v1044
  %v1065 = vmul.f32 %v995, %v1044
  %v1066 = vmul.f32 %v999, %v1044
  %v1067 = vmul.f32 %v1003, %v1044
  %v1068 = vmul.f32 %v1007, %v1044
  %v1069 = vmul.f32 %v1011, %v1044
  %v1070 = vmul.f32 %v1015, %v1044
  %v1071 = vmul.f32 %v1019, %v1044
  %v1072 = vmul.f32 %v1023, %v1044
  %v1073 = vmul.f32 %v1027, %v1044
  %v1074 = vmul.f32 %v1031, %v1044
  %v1075 = vmul.f32 %v1035, %v1044
  %v1076 = vmul.f32 %v1039, %v1044
  %v1077 = vadd.f32 %v880, %v1045
  %v1078 = vadd.f32 %v881, %v1046
  %v1079 = vadd.f32 %v882, %v1047
  %v1080 = vadd.f32 %v883, %v1048
  %v1081 = vadd.f32 %v884, %v1049
  %v1082 = vadd.f32 %v885, %v1050
  %v1083 = vadd.f32 %v886, %v1051
  %v1084 = vadd.f32 %v887, %v1052
  %v1085 = vadd.f32 %v888, %v1053
  %v1086 = vadd.f32 %v889, %v1054
  %v1087 = vadd.f32 %v890, %v1055
  %v1088 = vadd.f32 %v891, %v1056
  %v1089 = vadd.f32 %v892, %v1057
  %v1090 = vadd.f32 %v893, %v1058
  %v1091 = vadd.f32 %v894, %v1059
  %v1092 = vadd.f32 %v895, %v1060
  %v1093 = vadd.f32 %v896, %v1061
  %v1094 = vadd.f32 %v897, %v1062
  %v1095 = vadd.f32 %v898, %v1063
  %v1096 = vadd.f32 %v899, %v1064
  %v1097 = vadd.f32 %v900, %v1065
  %v1098 = vadd.f32 %v901, %v1066
  %v1099 = vadd.f32 %v902, %v1067
  %v1100 = vadd.f32 %v903, %v1068
  %v1101 = vadd.f32 %v904, %v1069
  %v1102 = vadd.f32 %v905, %v1070
  %v1103 = vadd.f32 %v906, %v1071
  %v1104 = vadd.f32 %v907, %v1072
  %v1105 = vadd.f32 %v908, %v1073
  %v1106 = vadd.f32 %v909, %v1074
  %v1107 = vadd.f32 %v910, %v1075
  %v1108 = vadd.f32 %v911, %v1076
  %v1109 = vld [vmem:[%s1 + $0x5] sm:$0x1]
  %1110 = vset.pattern.permute.xlu0 5
  %1111 = vperm.xlu0 %1110, %v53
  %v1112 = vpop.permute.xlu0 %1111
  %1114 = vset.pattern.permute.xlu0 5
  %1115 = vperm.xlu0 %1114, %v54
  %v1116 = vpop.permute.xlu0 %1115
  %1118 = vset.pattern.permute.xlu0 5
  %1119 = vperm.xlu0 %1118, %v55
  %v1120 = vpop.permute.xlu0 %1119
  %1122 = vset.pattern.permute.xlu0 5
  %1123 = vperm.xlu0 %1122, %v56
  %v1124 = vpop.permute.xlu0 %1123
  %1126 = vset.pattern.permute.xlu0 5
  %1127 = vperm.xlu0 %1126, %v57
  %v1128 = vpop.permute.xlu0 %1127
  %1130 = vset.pattern.permute.xlu0 5
  %1131 = vperm.xlu0 %1130, %v58
  %v1132 = vpop.permute.xlu0 %1131
  %1134 = vset.pattern.permute.xlu0 5
  %1135 = vperm.xlu0 %1134, %v59
  %v1136 = vpop.permute.xlu0 %1135
  %1138 = vset.pattern.permute.xlu0 5
  %1139 = vperm.xlu0 %1138, %v60
  %v1140 = vpop.permute.xlu0 %1139
  %1142 = vset.pattern.permute.xlu0 5
  %1143 = vperm.xlu0 %1142, %v61
  %v1144 = vpop.permute.xlu0 %1143
  %1146 = vset.pattern.permute.xlu0 5
  %1147 = vperm.xlu0 %1146, %v62
  %v1148 = vpop.permute.xlu0 %1147
  %1150 = vset.pattern.permute.xlu0 5
  %1151 = vperm.xlu0 %1150, %v63
  %v1152 = vpop.permute.xlu0 %1151
  %1154 = vset.pattern.permute.xlu0 5
  %1155 = vperm.xlu0 %1154, %v64
  %v1156 = vpop.permute.xlu0 %1155
  %1158 = vset.pattern.permute.xlu0 5
  %1159 = vperm.xlu0 %1158, %v65
  %v1160 = vpop.permute.xlu0 %1159
  %1162 = vset.pattern.permute.xlu0 5
  %1163 = vperm.xlu0 %1162, %v66
  %v1164 = vpop.permute.xlu0 %1163
  %1166 = vset.pattern.permute.xlu0 5
  %1167 = vperm.xlu0 %1166, %v67
  %v1168 = vpop.permute.xlu0 %1167
  %1170 = vset.pattern.permute.xlu0 5
  %1171 = vperm.xlu0 %1170, %v68
  %v1172 = vpop.permute.xlu0 %1171
  %1174 = vset.pattern.permute.xlu0 5
  %1175 = vperm.xlu0 %1174, %v69
  %v1176 = vpop.permute.xlu0 %1175
  %1178 = vset.pattern.permute.xlu0 5
  %1179 = vperm.xlu0 %1178, %v70
  %v1180 = vpop.permute.xlu0 %1179
  %1182 = vset.pattern.permute.xlu0 5
  %1183 = vperm.xlu0 %1182, %v71
  %v1184 = vpop.permute.xlu0 %1183
  %1186 = vset.pattern.permute.xlu0 5
  %1187 = vperm.xlu0 %1186, %v72
  %v1188 = vpop.permute.xlu0 %1187
  %1190 = vset.pattern.permute.xlu0 5
  %1191 = vperm.xlu0 %1190, %v73
  %v1192 = vpop.permute.xlu0 %1191
  %1194 = vset.pattern.permute.xlu0 5
  %1195 = vperm.xlu0 %1194, %v74
  %v1196 = vpop.permute.xlu0 %1195
  %1198 = vset.pattern.permute.xlu0 5
  %1199 = vperm.xlu0 %1198, %v75
  %v1200 = vpop.permute.xlu0 %1199
  %1202 = vset.pattern.permute.xlu0 5
  %1203 = vperm.xlu0 %1202, %v76
  %v1204 = vpop.permute.xlu0 %1203
  %1206 = vset.pattern.permute.xlu0 5
  %1207 = vperm.xlu0 %1206, %v77
  %v1208 = vpop.permute.xlu0 %1207
  %1210 = vset.pattern.permute.xlu0 5
  %1211 = vperm.xlu0 %1210, %v78
  %v1212 = vpop.permute.xlu0 %1211
  %1214 = vset.pattern.permute.xlu0 5
  %1215 = vperm.xlu0 %1214, %v79
  %v1216 = vpop.permute.xlu0 %1215
  %1218 = vset.pattern.permute.xlu0 5
  %1219 = vperm.xlu0 %1218, %v80
  %v1220 = vpop.permute.xlu0 %1219
  %1222 = vset.pattern.permute.xlu0 5
  %1223 = vperm.xlu0 %1222, %v81
  %v1224 = vpop.permute.xlu0 %1223
  %1226 = vset.pattern.permute.xlu0 5
  %1227 = vperm.xlu0 %1226, %v82
  %v1228 = vpop.permute.xlu0 %1227
  %1230 = vset.pattern.permute.xlu0 5
  %1231 = vperm.xlu0 %1230, %v83
  %v1232 = vpop.permute.xlu0 %1231
  %1234 = vset.pattern.permute.xlu0 5
  %1235 = vperm.xlu0 %1234, %v84
  %v1236 = vpop.permute.xlu0 %1235
  %v1238 = vlaneseq
  %v1239 = vshrl.u32 %v1238, 7
  %v1240 = vsub.s32 0, %v1239
  %v1241 = vrot.slane %v1109, %v1240
  %v1242 = vmul.f32 %v1112, %v1241
  %v1243 = vmul.f32 %v1116, %v1241
  %v1244 = vmul.f32 %v1120, %v1241
  %v1245 = vmul.f32 %v1124, %v1241
  %v1246 = vmul.f32 %v1128, %v1241
  %v1247 = vmul.f32 %v1132, %v1241
  %v1248 = vmul.f32 %v1136, %v1241
  %v1249 = vmul.f32 %v1140, %v1241
  %v1250 = vmul.f32 %v1144, %v1241
  %v1251 = vmul.f32 %v1148, %v1241
  %v1252 = vmul.f32 %v1152, %v1241
  %v1253 = vmul.f32 %v1156, %v1241
  %v1254 = vmul.f32 %v1160, %v1241
  %v1255 = vmul.f32 %v1164, %v1241
  %v1256 = vmul.f32 %v1168, %v1241
  %v1257 = vmul.f32 %v1172, %v1241
  %v1258 = vmul.f32 %v1176, %v1241
  %v1259 = vmul.f32 %v1180, %v1241
  %v1260 = vmul.f32 %v1184, %v1241
  %v1261 = vmul.f32 %v1188, %v1241
  %v1262 = vmul.f32 %v1192, %v1241
  %v1263 = vmul.f32 %v1196, %v1241
  %v1264 = vmul.f32 %v1200, %v1241
  %v1265 = vmul.f32 %v1204, %v1241
  %v1266 = vmul.f32 %v1208, %v1241
  %v1267 = vmul.f32 %v1212, %v1241
  %v1268 = vmul.f32 %v1216, %v1241
  %v1269 = vmul.f32 %v1220, %v1241
  %v1270 = vmul.f32 %v1224, %v1241
  %v1271 = vmul.f32 %v1228, %v1241
  %v1272 = vmul.f32 %v1232, %v1241
  %v1273 = vmul.f32 %v1236, %v1241
  %v1274 = vadd.f32 %v1077, %v1242
  %v1275 = vadd.f32 %v1078, %v1243
  %v1276 = vadd.f32 %v1079, %v1244
  %v1277 = vadd.f32 %v1080, %v1245
  %v1278 = vadd.f32 %v1081, %v1246
  %v1279 = vadd.f32 %v1082, %v1247
  %v1280 = vadd.f32 %v1083, %v1248
  %v1281 = vadd.f32 %v1084, %v1249
  %v1282 = vadd.f32 %v1085, %v1250
  %v1283 = vadd.f32 %v1086, %v1251
  %v1284 = vadd.f32 %v1087, %v1252
  %v1285 = vadd.f32 %v1088, %v1253
  %v1286 = vadd.f32 %v1089, %v1254
  %v1287 = vadd.f32 %v1090, %v1255
  %v1288 = vadd.f32 %v1091, %v1256
  %v1289 = vadd.f32 %v1092, %v1257
  %v1290 = vadd.f32 %v1093, %v1258
  %v1291 = vadd.f32 %v1094, %v1259
  %v1292 = vadd.f32 %v1095, %v1260
  %v1293 = vadd.f32 %v1096, %v1261
  %v1294 = vadd.f32 %v1097, %v1262
  %v1295 = vadd.f32 %v1098, %v1263
  %v1296 = vadd.f32 %v1099, %v1264
  %v1297 = vadd.f32 %v1100, %v1265
  %v1298 = vadd.f32 %v1101, %v1266
  %v1299 = vadd.f32 %v1102, %v1267
  %v1300 = vadd.f32 %v1103, %v1268
  %v1301 = vadd.f32 %v1104, %v1269
  %v1302 = vadd.f32 %v1105, %v1270
  %v1303 = vadd.f32 %v1106, %v1271
  %v1304 = vadd.f32 %v1107, %v1272
  %v1305 = vadd.f32 %v1108, %v1273
  %v1306 = vpack.c.bf16 %v1275, %v1274
  %v1307 = vpack.c.bf16 %v1277, %v1276
  %v1308 = vpack.c.bf16 %v1279, %v1278
  %v1309 = vpack.c.bf16 %v1281, %v1280
  %v1310 = vpack.c.bf16 %v1283, %v1282
  %v1311 = vpack.c.bf16 %v1285, %v1284
  %v1312 = vpack.c.bf16 %v1287, %v1286
  %v1313 = vpack.c.bf16 %v1289, %v1288
  %v1314 = vpack.c.bf16 %v1291, %v1290
  %v1315 = vpack.c.bf16 %v1293, %v1292
  %v1316 = vpack.c.bf16 %v1295, %v1294
  %v1317 = vpack.c.bf16 %v1297, %v1296
  %v1318 = vpack.c.bf16 %v1299, %v1298
  %v1319 = vpack.c.bf16 %v1301, %v1300
  %v1320 = vpack.c.bf16 %v1303, %v1302
  %v1321 = vpack.c.bf16 %v1305, %v1304
  %v1322 = vld [vmem:[%s3] sm:$0xf]
  %v1323 = vld [vmem:[%s3 + $0x4] sm:$0xf]
  %v1324 = vld [vmem:[%s3 + $0x8] sm:$0xf]
  %v1325 = vld [vmem:[%s3 + $0xc] sm:$0xf]
  %v1326 = vld [vmem:[%s3 + $0x10] sm:$0xf]
  %v1327 = vld [vmem:[%s3 + $0x14] sm:$0xf]
  %v1328 = vld [vmem:[%s3 + $0x18] sm:$0xf]
  %v1329 = vld [vmem:[%s3 + $0x1c] sm:$0xf]
  %v1330 = vld [vmem:[%s3 + $0x20] sm:$0xf]
  %v1331 = vld [vmem:[%s3 + $0x24] sm:$0xf]
  %v1332 = vld [vmem:[%s3 + $0x28] sm:$0xf]
  %v1333 = vld [vmem:[%s3 + $0x2c] sm:$0xf]
  %v1334 = vld [vmem:[%s3 + $0x30] sm:$0xf]
  %v1335 = vld [vmem:[%s3 + $0x34] sm:$0xf]
  %v1336 = vld [vmem:[%s3 + $0x38] sm:$0xf]
  %v1337 = vld [vmem:[%s3 + $0x3c] sm:$0xf]
  %v1338 = vld [vmem:[%s4] sm:$0x1]
  %v1340 = vlaneseq
  %v1341 = vshrl.u32 %v1340, 7
  %v1342 = vsub.s32 0, %v1341
  %v1343 = vrot.slane %v1338, %v1342
  %v1361 = vunpack.c.l.b16 %v1322
  %v1362 = vunpack.c.l.b16 %v1323
  %v1363 = vunpack.c.l.b16 %v1324
  %v1364 = vunpack.c.l.b16 %v1325
  %v1365 = vunpack.c.l.b16 %v1326
  %v1366 = vunpack.c.l.b16 %v1327
  %v1367 = vunpack.c.l.b16 %v1328
  %v1368 = vunpack.c.l.b16 %v1329
  %v1369 = vunpack.c.l.b16 %v1330
  %v1370 = vunpack.c.l.b16 %v1331
  %v1371 = vunpack.c.l.b16 %v1332
  %v1372 = vunpack.c.l.b16 %v1333
  %v1373 = vunpack.c.l.b16 %v1334
  %v1374 = vunpack.c.l.b16 %v1335
  %v1375 = vunpack.c.l.b16 %v1336
  %v1376 = vunpack.c.l.b16 %v1337
  %v1377 = vpack.c.b16 %v1362, %v1361
  %v1378 = vpack.c.b16 %v1364, %v1363
  %v1379 = vpack.c.b16 %v1366, %v1365
  %v1380 = vpack.c.b16 %v1368, %v1367
  %v1381 = vpack.c.b16 %v1370, %v1369
  %v1382 = vpack.c.b16 %v1372, %v1371
  %v1383 = vpack.c.b16 %v1374, %v1373
  %v1384 = vpack.c.b16 %v1376, %v1375
  %1393 = vmatprep.subr.bf16.mxu0 0
  %1394 = vmatpush1.bf16.msra.mxu0 %v1377
  %1395 = vmatprep.subr.bf16.mxu0 0
  %1396 = vmatpush1.bf16.msra.mxu0 %v1378
  %1397 = vmatprep.subr.bf16.mxu0 0
  %1398 = vmatpush1.bf16.msra.mxu0 %v1379
  %1399 = vmatprep.subr.bf16.mxu0 0
  %1400 = vmatpush1.bf16.msra.mxu0 %v1380
  %1401 = vmatprep.subr.bf16.mxu0 0
  %1402 = vmatpush1.bf16.msra.mxu0 %v1381
  %1403 = vmatprep.subr.bf16.mxu0 0
  %1404 = vmatpush1.bf16.msra.mxu0 %v1382
  %1405 = vmatprep.subr.bf16.mxu0 0
  %1406 = vmatpush1.bf16.msra.mxu0 %v1383
  %1407 = vmatprep.subr.bf16.mxu0 0
  %1408 = vmatpush1.bf16.msra.mxu0 %v1384
  %1409 = vmatprep.subr.bf16.mxu0 0
  %1410 = vmatpush1.bf16.msra.mxu0 0
  %1411 = vmatprep.subr.bf16.mxu0 0
  %1412 = vmatpush1.bf16.msra.mxu0 0
  %1413 = vmatprep.subr.bf16.mxu0 0
  %1414 = vmatpush1.bf16.msra.mxu0 0
  %1415 = vmatprep.subr.bf16.mxu0 0
  %1416 = vmatpush1.bf16.msra.mxu0 0
  %1417 = vmatprep.subr.bf16.mxu0 0
  %1418 = vmatpush1.bf16.msra.mxu0 0
  %1419 = vmatprep.subr.bf16.mxu0 0
  %1420 = vmatpush1.bf16.msra.mxu0 0
  %1421 = vmatprep.subr.bf16.mxu0 0
  %1422 = vmatpush1.bf16.msra.mxu0 0
  %1423 = vmatprep.subr.bf16.mxu0 0
  %1424 = vmatpush1.bf16.msra.mxu0 0
  %1425 = vmatprep.mubr.bf16.mxu0 0
  %1426 = vmatmul.mubr.bf16.gmra.mrb[0].mxu0 %v1306
  %v1427 = vpop.f32.mrb[0].mxu0
  %v1428 = vadd.f32 %v1343, %v1427
  %v1429 = vpop.f32.mrb[0].mxu0
  %v1430 = vpop.f32.mrb[0].mxu0
  %v1431 = vadd.f32 %v1343, %v1430
  %v1432 = vpop.f32.mrb[0].mxu0
  %1433 = vmatprep.mubr.bf16.mxu0 0
  %1434 = vmatmul.mubr.bf16.gmra.mrb[0].mxu0 %v1307
  %v1435 = vpop.f32.mrb[0].mxu0
  %v1436 = vadd.f32 %v1343, %v1435
  %v1437 = vpop.f32.mrb[0].mxu0
  %v1438 = vpop.f32.mrb[0].mxu0
  %v1439 = vadd.f32 %v1343, %v1438
  %v1440 = vpop.f32.mrb[0].mxu0
  %1441 = vmatprep.mubr.bf16.mxu0 0
  %1442 = vmatmul.mubr.bf16.gmra.mrb[0].mxu0 %v1308
  %v1443 = vpop.f32.mrb[0].mxu0
  %v1444 = vadd.f32 %v1343, %v1443
  %v1445 = vpop.f32.mrb[0].mxu0
  %v1446 = vpop.f32.mrb[0].mxu0
  %v1447 = vadd.f32 %v1343, %v1446
  %v1448 = vpop.f32.mrb[0].mxu0
  %1449 = vmatprep.mubr.bf16.mxu0 0
  %1450 = vmatmul.mubr.bf16.gmra.mrb[0].mxu0 %v1309
  %v1451 = vpop.f32.mrb[0].mxu0
  %v1452 = vadd.f32 %v1343, %v1451
  %v1453 = vpop.f32.mrb[0].mxu0
  %v1454 = vpop.f32.mrb[0].mxu0
  %v1455 = vadd.f32 %v1343, %v1454
  %v1456 = vpop.f32.mrb[0].mxu0
  %1457 = vmatprep.mubr.bf16.mxu0 0
  %1458 = vmatmul.mubr.bf16.gmra.mrb[0].mxu0 %v1310
  %v1459 = vpop.f32.mrb[0].mxu0
  %v1460 = vadd.f32 %v1343, %v1459
  %v1461 = vpop.f32.mrb[0].mxu0
  %v1462 = vpop.f32.mrb[0].mxu0
  %v1463 = vadd.f32 %v1343, %v1462
  %v1464 = vpop.f32.mrb[0].mxu0
  %1465 = vmatprep.mubr.bf16.mxu0 0
  %1466 = vmatmul.mubr.bf16.gmra.mrb[0].mxu0 %v1311
  %v1467 = vpop.f32.mrb[0].mxu0
  %v1468 = vadd.f32 %v1343, %v1467
  %v1469 = vpop.f32.mrb[0].mxu0
  %v1470 = vpop.f32.mrb[0].mxu0
  %v1471 = vadd.f32 %v1343, %v1470
  %v1472 = vpop.f32.mrb[0].mxu0
  %1473 = vmatprep.mubr.bf16.mxu0 0
  %1474 = vmatmul.mubr.bf16.gmra.mrb[0].mxu0 %v1312
  %v1475 = vpop.f32.mrb[0].mxu0
  %v1476 = vadd.f32 %v1343, %v1475
  %v1477 = vpop.f32.mrb[0].mxu0
  %v1478 = vpop.f32.mrb[0].mxu0
  %v1479 = vadd.f32 %v1343, %v1478
  %v1480 = vpop.f32.mrb[0].mxu0
  %1481 = vmatprep.mubr.bf16.mxu0 0
  %1482 = vmatmul.mubr.bf16.gmra.mrb[0].mxu0 %v1313
  %v1483 = vpop.f32.mrb[0].mxu0
  %v1484 = vadd.f32 %v1343, %v1483
  %v1485 = vpop.f32.mrb[0].mxu0
  %v1486 = vpop.f32.mrb[0].mxu0
  %v1487 = vadd.f32 %v1343, %v1486
  %v1488 = vpop.f32.mrb[0].mxu0
  %1489 = vmatprep.mubr.bf16.mxu0 0
  %1490 = vmatmul.mubr.bf16.gmra.mrb[0].mxu0 %v1314
  %v1491 = vpop.f32.mrb[0].mxu0
  %v1492 = vadd.f32 %v1343, %v1491
  %v1493 = vpop.f32.mrb[0].mxu0
  %v1494 = vpop.f32.mrb[0].mxu0
  %v1495 = vadd.f32 %v1343, %v1494
  %v1496 = vpop.f32.mrb[0].mxu0
  %1497 = vmatprep.mubr.bf16.mxu0 0
  %1498 = vmatmul.mubr.bf16.gmra.mrb[0].mxu0 %v1315
  %v1499 = vpop.f32.mrb[0].mxu0
  %v1500 = vadd.f32 %v1343, %v1499
  %v1501 = vpop.f32.mrb[0].mxu0
  %v1502 = vpop.f32.mrb[0].mxu0
  %v1503 = vadd.f32 %v1343, %v1502
  %v1504 = vpop.f32.mrb[0].mxu0
  %1505 = vmatprep.mubr.bf16.mxu0 0
  %1506 = vmatmul.mubr.bf16.gmra.mrb[0].mxu0 %v1316
  %v1507 = vpop.f32.mrb[0].mxu0
  %v1508 = vadd.f32 %v1343, %v1507
  %v1509 = vpop.f32.mrb[0].mxu0
  %v1510 = vpop.f32.mrb[0].mxu0
  %v1511 = vadd.f32 %v1343, %v1510
  %v1512 = vpop.f32.mrb[0].mxu0
  %1513 = vmatprep.mubr.bf16.mxu0 0
  %1514 = vmatmul.mubr.bf16.gmra.mrb[0].mxu0 %v1317
  %v1515 = vpop.f32.mrb[0].mxu0
  %v1516 = vadd.f32 %v1343, %v1515
  %v1517 = vpop.f32.mrb[0].mxu0
  %v1518 = vpop.f32.mrb[0].mxu0
  %v1519 = vadd.f32 %v1343, %v1518
  %v1520 = vpop.f32.mrb[0].mxu0
  %1521 = vmatprep.mubr.bf16.mxu0 0
  %1522 = vmatmul.mubr.bf16.gmra.mrb[0].mxu0 %v1318
  %v1523 = vpop.f32.mrb[0].mxu0
  %v1524 = vadd.f32 %v1343, %v1523
  %v1525 = vpop.f32.mrb[0].mxu0
  %v1526 = vpop.f32.mrb[0].mxu0
  %v1527 = vadd.f32 %v1343, %v1526
  %v1528 = vpop.f32.mrb[0].mxu0
  %1529 = vmatprep.mubr.bf16.mxu0 0
  %1530 = vmatmul.mubr.bf16.gmra.mrb[0].mxu0 %v1319
  %v1531 = vpop.f32.mrb[0].mxu0
  %v1532 = vadd.f32 %v1343, %v1531
  %v1533 = vpop.f32.mrb[0].mxu0
  %v1534 = vpop.f32.mrb[0].mxu0
  %v1535 = vadd.f32 %v1343, %v1534
  %v1536 = vpop.f32.mrb[0].mxu0
  %1537 = vmatprep.mubr.bf16.mxu0 0
  %1538 = vmatmul.mubr.bf16.gmra.mrb[0].mxu0 %v1320
  %v1539 = vpop.f32.mrb[0].mxu0
  %v1540 = vadd.f32 %v1343, %v1539
  %v1541 = vpop.f32.mrb[0].mxu0
  %v1542 = vpop.f32.mrb[0].mxu0
  %v1543 = vadd.f32 %v1343, %v1542
  %v1544 = vpop.f32.mrb[0].mxu0
  %1545 = vmatprep.mubr.bf16.mxu0 0
  %1546 = vmatmul.mubr.bf16.gmra.mrb[0].mxu0 %v1321
  %v1547 = vpop.f32.mrb[0].mxu0
  %v1548 = vadd.f32 %v1343, %v1547
  %v1549 = vpop.f32.mrb[0].mxu0
  %v1550 = vpop.f32.mrb[0].mxu0
  %v1551 = vadd.f32 %v1343, %v1550
  %v1552 = vpop.f32.mrb[0].mxu0
  %1553 = vdwg.mxu0
  %v1554 = vld [vmem:[%s5] sm:$0x1]
  %v1555 = vld [vmem:[%s6] sm:$0x1]
  %1556 = vadd.xlane.f32.xlu0 %v1428
  %v1557 = vpop.xlane.xlu0 %1556
  %1558 = vadd.xlane.f32.xlu0 %v1431
  %v1559 = vpop.xlane.xlu0 %1558
  %1560 = vadd.xlane.f32.xlu0 %v1436
  %v1561 = vpop.xlane.xlu0 %1560
  %1562 = vadd.xlane.f32.xlu0 %v1439
  %v1563 = vpop.xlane.xlu0 %1562
  %1564 = vadd.xlane.f32.xlu0 %v1444
  %v1565 = vpop.xlane.xlu0 %1564
  %1566 = vadd.xlane.f32.xlu0 %v1447
  %v1567 = vpop.xlane.xlu0 %1566
  %1568 = vadd.xlane.f32.xlu0 %v1452
  %v1569 = vpop.xlane.xlu0 %1568
  %1570 = vadd.xlane.f32.xlu0 %v1455
  %v1571 = vpop.xlane.xlu0 %1570
  %1572 = vadd.xlane.f32.xlu0 %v1460
  %v1573 = vpop.xlane.xlu0 %1572
  %1574 = vadd.xlane.f32.xlu0 %v1463
  %v1575 = vpop.xlane.xlu0 %1574
  %1576 = vadd.xlane.f32.xlu0 %v1468
  %v1577 = vpop.xlane.xlu0 %1576
  %1578 = vadd.xlane.f32.xlu0 %v1471
  %v1579 = vpop.xlane.xlu0 %1578
  %1580 = vadd.xlane.f32.xlu0 %v1476
  %v1581 = vpop.xlane.xlu0 %1580
  %1582 = vadd.xlane.f32.xlu0 %v1479
  %v1583 = vpop.xlane.xlu0 %1582
  %1584 = vadd.xlane.f32.xlu0 %v1484
  %v1585 = vpop.xlane.xlu0 %1584
  %1586 = vadd.xlane.f32.xlu0 %v1487
  %v1587 = vpop.xlane.xlu0 %1586
  %1588 = vadd.xlane.f32.xlu0 %v1492
  %v1589 = vpop.xlane.xlu0 %1588
  %1590 = vadd.xlane.f32.xlu0 %v1495
  %v1591 = vpop.xlane.xlu0 %1590
  %1592 = vadd.xlane.f32.xlu0 %v1500
  %v1593 = vpop.xlane.xlu0 %1592
  %1594 = vadd.xlane.f32.xlu0 %v1503
  %v1595 = vpop.xlane.xlu0 %1594
  %1596 = vadd.xlane.f32.xlu0 %v1508
  %v1597 = vpop.xlane.xlu0 %1596
  %1598 = vadd.xlane.f32.xlu0 %v1511
  %v1599 = vpop.xlane.xlu0 %1598
  %1600 = vadd.xlane.f32.xlu0 %v1516
  %v1601 = vpop.xlane.xlu0 %1600
  %1602 = vadd.xlane.f32.xlu0 %v1519
  %v1603 = vpop.xlane.xlu0 %1602
  %1604 = vadd.xlane.f32.xlu0 %v1524
  %v1605 = vpop.xlane.xlu0 %1604
  %1606 = vadd.xlane.f32.xlu0 %v1527
  %v1607 = vpop.xlane.xlu0 %1606
  %1608 = vadd.xlane.f32.xlu0 %v1532
  %v1609 = vpop.xlane.xlu0 %1608
  %1610 = vadd.xlane.f32.xlu0 %v1535
  %v1611 = vpop.xlane.xlu0 %1610
  %1612 = vadd.xlane.f32.xlu0 %v1540
  %v1613 = vpop.xlane.xlu0 %1612
  %1614 = vadd.xlane.f32.xlu0 %v1543
  %v1615 = vpop.xlane.xlu0 %1614
  %1616 = vadd.xlane.f32.xlu0 %v1548
  %v1617 = vpop.xlane.xlu0 %1616
  %1618 = vadd.xlane.f32.xlu0 %v1551
  %v1619 = vpop.xlane.xlu0 %1618
  %v1620 = vrcp.pop 128.0
  %v1621 = vmul.f32 %v1557, %v1620
  %v1622 = vmul.f32 %v1559, %v1620
  %v1623 = vmul.f32 %v1561, %v1620
  %v1624 = vmul.f32 %v1563, %v1620
  %v1625 = vmul.f32 %v1565, %v1620
  %v1626 = vmul.f32 %v1567, %v1620
  %v1627 = vmul.f32 %v1569, %v1620
  %v1628 = vmul.f32 %v1571, %v1620
  %v1629 = vmul.f32 %v1573, %v1620
  %v1630 = vmul.f32 %v1575, %v1620
  %v1631 = vmul.f32 %v1577, %v1620
  %v1632 = vmul.f32 %v1579, %v1620
  %v1633 = vmul.f32 %v1581, %v1620
  %v1634 = vmul.f32 %v1583, %v1620
  %v1635 = vmul.f32 %v1585, %v1620
  %v1636 = vmul.f32 %v1587, %v1620
  %v1637 = vmul.f32 %v1589, %v1620
  %v1638 = vmul.f32 %v1591, %v1620
  %v1639 = vmul.f32 %v1593, %v1620
  %v1640 = vmul.f32 %v1595, %v1620
  %v1641 = vmul.f32 %v1597, %v1620
  %v1642 = vmul.f32 %v1599, %v1620
  %v1643 = vmul.f32 %v1601, %v1620
  %v1644 = vmul.f32 %v1603, %v1620
  %v1645 = vmul.f32 %v1605, %v1620
  %v1646 = vmul.f32 %v1607, %v1620
  %v1647 = vmul.f32 %v1609, %v1620
  %v1648 = vmul.f32 %v1611, %v1620
  %v1649 = vmul.f32 %v1613, %v1620
  %v1650 = vmul.f32 %v1615, %v1620
  %v1651 = vmul.f32 %v1617, %v1620
  %v1652 = vmul.f32 %v1619, %v1620
  %v1653 = vmul.f32 %v1428, %v1428
  %v1654 = vmul.f32 %v1431, %v1431
  %v1655 = vmul.f32 %v1436, %v1436
  %v1656 = vmul.f32 %v1439, %v1439
  %v1657 = vmul.f32 %v1444, %v1444
  %v1658 = vmul.f32 %v1447, %v1447
  %v1659 = vmul.f32 %v1452, %v1452
  %v1660 = vmul.f32 %v1455, %v1455
  %v1661 = vmul.f32 %v1460, %v1460
  %v1662 = vmul.f32 %v1463, %v1463
  %v1663 = vmul.f32 %v1468, %v1468
  %v1664 = vmul.f32 %v1471, %v1471
  %v1665 = vmul.f32 %v1476, %v1476
  %v1666 = vmul.f32 %v1479, %v1479
  %v1667 = vmul.f32 %v1484, %v1484
  %v1668 = vmul.f32 %v1487, %v1487
  %v1669 = vmul.f32 %v1492, %v1492
  %v1670 = vmul.f32 %v1495, %v1495
  %v1671 = vmul.f32 %v1500, %v1500
  %v1672 = vmul.f32 %v1503, %v1503
  %v1673 = vmul.f32 %v1508, %v1508
  %v1674 = vmul.f32 %v1511, %v1511
  %v1675 = vmul.f32 %v1516, %v1516
  %v1676 = vmul.f32 %v1519, %v1519
  %v1677 = vmul.f32 %v1524, %v1524
  %v1678 = vmul.f32 %v1527, %v1527
  %v1679 = vmul.f32 %v1532, %v1532
  %v1680 = vmul.f32 %v1535, %v1535
  %v1681 = vmul.f32 %v1540, %v1540
  %v1682 = vmul.f32 %v1543, %v1543
  %v1683 = vmul.f32 %v1548, %v1548
  %v1684 = vmul.f32 %v1551, %v1551
  %1685 = vadd.xlane.f32.xlu0 %v1653
  %v1686 = vpop.xlane.xlu0 %1685
  %1687 = vadd.xlane.f32.xlu0 %v1654
  %v1688 = vpop.xlane.xlu0 %1687
  %1689 = vadd.xlane.f32.xlu0 %v1655
  %v1690 = vpop.xlane.xlu0 %1689
  %1691 = vadd.xlane.f32.xlu0 %v1656
  %v1692 = vpop.xlane.xlu0 %1691
  %1693 = vadd.xlane.f32.xlu0 %v1657
  %v1694 = vpop.xlane.xlu0 %1693
  %1695 = vadd.xlane.f32.xlu0 %v1658
  %v1696 = vpop.xlane.xlu0 %1695
  %1697 = vadd.xlane.f32.xlu0 %v1659
  %v1698 = vpop.xlane.xlu0 %1697
  %1699 = vadd.xlane.f32.xlu0 %v1660
  %v1700 = vpop.xlane.xlu0 %1699
  %1701 = vadd.xlane.f32.xlu0 %v1661
  %v1702 = vpop.xlane.xlu0 %1701
  %1703 = vadd.xlane.f32.xlu0 %v1662
  %v1704 = vpop.xlane.xlu0 %1703
  %1705 = vadd.xlane.f32.xlu0 %v1663
  %v1706 = vpop.xlane.xlu0 %1705
  %1707 = vadd.xlane.f32.xlu0 %v1664
  %v1708 = vpop.xlane.xlu0 %1707
  %1709 = vadd.xlane.f32.xlu0 %v1665
  %v1710 = vpop.xlane.xlu0 %1709
  %1711 = vadd.xlane.f32.xlu0 %v1666
  %v1712 = vpop.xlane.xlu0 %1711
  %1713 = vadd.xlane.f32.xlu0 %v1667
  %v1714 = vpop.xlane.xlu0 %1713
  %1715 = vadd.xlane.f32.xlu0 %v1668
  %v1716 = vpop.xlane.xlu0 %1715
  %1717 = vadd.xlane.f32.xlu0 %v1669
  %v1718 = vpop.xlane.xlu0 %1717
  %1719 = vadd.xlane.f32.xlu0 %v1670
  %v1720 = vpop.xlane.xlu0 %1719
  %1721 = vadd.xlane.f32.xlu0 %v1671
  %v1722 = vpop.xlane.xlu0 %1721
  %1723 = vadd.xlane.f32.xlu0 %v1672
  %v1724 = vpop.xlane.xlu0 %1723
  %1725 = vadd.xlane.f32.xlu0 %v1673
  %v1726 = vpop.xlane.xlu0 %1725
  %1727 = vadd.xlane.f32.xlu0 %v1674
  %v1728 = vpop.xlane.xlu0 %1727
  %1729 = vadd.xlane.f32.xlu0 %v1675
  %v1730 = vpop.xlane.xlu0 %1729
  %1731 = vadd.xlane.f32.xlu0 %v1676
  %v1732 = vpop.xlane.xlu0 %1731
  %1733 = vadd.xlane.f32.xlu0 %v1677
  %v1734 = vpop.xlane.xlu0 %1733
  %1735 = vadd.xlane.f32.xlu0 %v1678
  %v1736 = vpop.xlane.xlu0 %1735
  %1737 = vadd.xlane.f32.xlu0 %v1679
  %v1738 = vpop.xlane.xlu0 %1737
  %1739 = vadd.xlane.f32.xlu0 %v1680
  %v1740 = vpop.xlane.xlu0 %1739
  %1741 = vadd.xlane.f32.xlu0 %v1681
  %v1742 = vpop.xlane.xlu0 %1741
  %1743 = vadd.xlane.f32.xlu0 %v1682
  %v1744 = vpop.xlane.xlu0 %1743
  %1745 = vadd.xlane.f32.xlu0 %v1683
  %v1746 = vpop.xlane.xlu0 %1745
  %1747 = vadd.xlane.f32.xlu0 %v1684
  %v1748 = vpop.xlane.xlu0 %1747
  %v1749 = vmul.f32 %v1686, %v1620
  %v1750 = vmul.f32 %v1688, %v1620
  %v1751 = vmul.f32 %v1690, %v1620
  %v1752 = vmul.f32 %v1692, %v1620
  %v1753 = vmul.f32 %v1694, %v1620
  %v1754 = vmul.f32 %v1696, %v1620
  %v1755 = vmul.f32 %v1698, %v1620
  %v1756 = vmul.f32 %v1700, %v1620
  %v1757 = vmul.f32 %v1702, %v1620
  %v1758 = vmul.f32 %v1704, %v1620
  %v1759 = vmul.f32 %v1706, %v1620
  %v1760 = vmul.f32 %v1708, %v1620
  %v1761 = vmul.f32 %v1710, %v1620
  %v1762 = vmul.f32 %v1712, %v1620
  %v1763 = vmul.f32 %v1714, %v1620
  %v1764 = vmul.f32 %v1716, %v1620
  %v1765 = vmul.f32 %v1718, %v1620
  %v1766 = vmul.f32 %v1720, %v1620
  %v1767 = vmul.f32 %v1722, %v1620
  %v1768 = vmul.f32 %v1724, %v1620
  %v1769 = vmul.f32 %v1726, %v1620
  %v1770 = vmul.f32 %v1728, %v1620
  %v1771 = vmul.f32 %v1730, %v1620
  %v1772 = vmul.f32 %v1732, %v1620
  %v1773 = vmul.f32 %v1734, %v1620
  %v1774 = vmul.f32 %v1736, %v1620
  %v1775 = vmul.f32 %v1738, %v1620
  %v1776 = vmul.f32 %v1740, %v1620
  %v1777 = vmul.f32 %v1742, %v1620
  %v1778 = vmul.f32 %v1744, %v1620
  %v1779 = vmul.f32 %v1746, %v1620
  %v1780 = vmul.f32 %v1748, %v1620
  %v1781 = vmul.f32 %v1621, %v1621
  %v1782 = vmul.f32 %v1622, %v1622
  %v1783 = vmul.f32 %v1623, %v1623
  %v1784 = vmul.f32 %v1624, %v1624
  %v1785 = vmul.f32 %v1625, %v1625
  %v1786 = vmul.f32 %v1626, %v1626
  %v1787 = vmul.f32 %v1627, %v1627
  %v1788 = vmul.f32 %v1628, %v1628
  %v1789 = vmul.f32 %v1629, %v1629
  %v1790 = vmul.f32 %v1630, %v1630
  %v1791 = vmul.f32 %v1631, %v1631
  %v1792 = vmul.f32 %v1632, %v1632
  %v1793 = vmul.f32 %v1633, %v1633
  %v1794 = vmul.f32 %v1634, %v1634
  %v1795 = vmul.f32 %v1635, %v1635
  %v1796 = vmul.f32 %v1636, %v1636
  %v1797 = vmul.f32 %v1637, %v1637
  %v1798 = vmul.f32 %v1638, %v1638
  %v1799 = vmul.f32 %v1639, %v1639
  %v1800 = vmul.f32 %v1640, %v1640
  %v1801 = vmul.f32 %v1641, %v1641
  %v1802 = vmul.f32 %v1642, %v1642
  %v1803 = vmul.f32 %v1643, %v1643
  %v1804 = vmul.f32 %v1644, %v1644
  %v1805 = vmul.f32 %v1645, %v1645
  %v1806 = vmul.f32 %v1646, %v1646
  %v1807 = vmul.f32 %v1647, %v1647
  %v1808 = vmul.f32 %v1648, %v1648
  %v1809 = vmul.f32 %v1649, %v1649
  %v1810 = vmul.f32 %v1650, %v1650
  %v1811 = vmul.f32 %v1651, %v1651
  %v1812 = vmul.f32 %v1652, %v1652
  %v1813 = vsub.f32 %v1749, %v1781
  %v1814 = vsub.f32 %v1750, %v1782
  %v1815 = vsub.f32 %v1751, %v1783
  %v1816 = vsub.f32 %v1752, %v1784
  %v1817 = vsub.f32 %v1753, %v1785
  %v1818 = vsub.f32 %v1754, %v1786
  %v1819 = vsub.f32 %v1755, %v1787
  %v1820 = vsub.f32 %v1756, %v1788
  %v1821 = vsub.f32 %v1757, %v1789
  %v1822 = vsub.f32 %v1758, %v1790
  %v1823 = vsub.f32 %v1759, %v1791
  %v1824 = vsub.f32 %v1760, %v1792
  %v1825 = vsub.f32 %v1761, %v1793
  %v1826 = vsub.f32 %v1762, %v1794
  %v1827 = vsub.f32 %v1763, %v1795
  %v1828 = vsub.f32 %v1764, %v1796
  %v1829 = vsub.f32 %v1765, %v1797
  %v1830 = vsub.f32 %v1766, %v1798
  %v1831 = vsub.f32 %v1767, %v1799
  %v1832 = vsub.f32 %v1768, %v1800
  %v1833 = vsub.f32 %v1769, %v1801
  %v1834 = vsub.f32 %v1770, %v1802
  %v1835 = vsub.f32 %v1771, %v1803
  %v1836 = vsub.f32 %v1772, %v1804
  %v1837 = vsub.f32 %v1773, %v1805
  %v1838 = vsub.f32 %v1774, %v1806
  %v1839 = vsub.f32 %v1775, %v1807
  %v1840 = vsub.f32 %v1776, %v1808
  %v1841 = vsub.f32 %v1777, %v1809
  %v1842 = vsub.f32 %v1778, %v1810
  %v1843 = vsub.f32 %v1779, %v1811
  %v1844 = vsub.f32 %v1780, %v1812
  %v1845 = vmax.f32 %v1813, 0.0
  %v1846 = vmax.f32 %v1814, 0.0
  %v1847 = vmax.f32 %v1815, 0.0
  %v1848 = vmax.f32 %v1816, 0.0
  %v1849 = vmax.f32 %v1817, 0.0
  %v1850 = vmax.f32 %v1818, 0.0
  %v1851 = vmax.f32 %v1819, 0.0
  %v1852 = vmax.f32 %v1820, 0.0
  %v1853 = vmax.f32 %v1821, 0.0
  %v1854 = vmax.f32 %v1822, 0.0
  %v1855 = vmax.f32 %v1823, 0.0
  %v1856 = vmax.f32 %v1824, 0.0
  %v1857 = vmax.f32 %v1825, 0.0
  %v1858 = vmax.f32 %v1826, 0.0
  %v1859 = vmax.f32 %v1827, 0.0
  %v1860 = vmax.f32 %v1828, 0.0
  %v1861 = vmax.f32 %v1829, 0.0
  %v1862 = vmax.f32 %v1830, 0.0
  %v1863 = vmax.f32 %v1831, 0.0
  %v1864 = vmax.f32 %v1832, 0.0
  %v1865 = vmax.f32 %v1833, 0.0
  %v1866 = vmax.f32 %v1834, 0.0
  %v1867 = vmax.f32 %v1835, 0.0
  %v1868 = vmax.f32 %v1836, 0.0
  %v1869 = vmax.f32 %v1837, 0.0
  %v1870 = vmax.f32 %v1838, 0.0
  %v1871 = vmax.f32 %v1839, 0.0
  %v1872 = vmax.f32 %v1840, 0.0
  %v1873 = vmax.f32 %v1841, 0.0
  %v1874 = vmax.f32 %v1842, 0.0
  %v1875 = vmax.f32 %v1843, 0.0
  %v1876 = vmax.f32 %v1844, 0.0
  %v1877 = vsub.f32 %v1428, %v1621
  %v1878 = vsub.f32 %v1431, %v1622
  %v1879 = vsub.f32 %v1436, %v1623
  %v1880 = vsub.f32 %v1439, %v1624
  %v1881 = vsub.f32 %v1444, %v1625
  %v1882 = vsub.f32 %v1447, %v1626
  %v1883 = vsub.f32 %v1452, %v1627
  %v1884 = vsub.f32 %v1455, %v1628
  %v1885 = vsub.f32 %v1460, %v1629
  %v1886 = vsub.f32 %v1463, %v1630
  %v1887 = vsub.f32 %v1468, %v1631
  %v1888 = vsub.f32 %v1471, %v1632
  %v1889 = vsub.f32 %v1476, %v1633
  %v1890 = vsub.f32 %v1479, %v1634
  %v1891 = vsub.f32 %v1484, %v1635
  %v1892 = vsub.f32 %v1487, %v1636
  %v1893 = vsub.f32 %v1492, %v1637
  %v1894 = vsub.f32 %v1495, %v1638
  %v1895 = vsub.f32 %v1500, %v1639
  %v1896 = vsub.f32 %v1503, %v1640
  %v1897 = vsub.f32 %v1508, %v1641
  %v1898 = vsub.f32 %v1511, %v1642
  %v1899 = vsub.f32 %v1516, %v1643
  %v1900 = vsub.f32 %v1519, %v1644
  %v1901 = vsub.f32 %v1524, %v1645
  %v1902 = vsub.f32 %v1527, %v1646
  %v1903 = vsub.f32 %v1532, %v1647
  %v1904 = vsub.f32 %v1535, %v1648
  %v1905 = vsub.f32 %v1540, %v1649
  %v1906 = vsub.f32 %v1543, %v1650
  %v1907 = vsub.f32 %v1548, %v1651
  %v1908 = vsub.f32 %v1551, %v1652
  %v1909 = vadd.f32 %v1845, 1e-05
  %v1910 = vadd.f32 %v1846, 1e-05
  %v1911 = vadd.f32 %v1847, 1e-05
  %v1912 = vadd.f32 %v1848, 1e-05
  %v1913 = vadd.f32 %v1849, 1e-05
  %v1914 = vadd.f32 %v1850, 1e-05
  %v1915 = vadd.f32 %v1851, 1e-05
  %v1916 = vadd.f32 %v1852, 1e-05
  %v1917 = vadd.f32 %v1853, 1e-05
  %v1918 = vadd.f32 %v1854, 1e-05
  %v1919 = vadd.f32 %v1855, 1e-05
  %v1920 = vadd.f32 %v1856, 1e-05
  %v1921 = vadd.f32 %v1857, 1e-05
  %v1922 = vadd.f32 %v1858, 1e-05
  %v1923 = vadd.f32 %v1859, 1e-05
  %v1924 = vadd.f32 %v1860, 1e-05
  %v1925 = vadd.f32 %v1861, 1e-05
  %v1926 = vadd.f32 %v1862, 1e-05
  %v1927 = vadd.f32 %v1863, 1e-05
  %v1928 = vadd.f32 %v1864, 1e-05
  %v1929 = vadd.f32 %v1865, 1e-05
  %v1930 = vadd.f32 %v1866, 1e-05
  %v1931 = vadd.f32 %v1867, 1e-05
  %v1932 = vadd.f32 %v1868, 1e-05
  %v1933 = vadd.f32 %v1869, 1e-05
  %v1934 = vadd.f32 %v1870, 1e-05
  %v1935 = vadd.f32 %v1871, 1e-05
  %v1936 = vadd.f32 %v1872, 1e-05
  %v1937 = vadd.f32 %v1873, 1e-05
  %v1938 = vadd.f32 %v1874, 1e-05
  %v1939 = vadd.f32 %v1875, 1e-05
  %v1940 = vadd.f32 %v1876, 1e-05
  %v1941 = vrsqrt.pop %v1909
  %v1942 = vrsqrt.pop %v1910
  %v1943 = vrsqrt.pop %v1911
  %v1944 = vrsqrt.pop %v1912
  %v1945 = vrsqrt.pop %v1913
  %v1946 = vrsqrt.pop %v1914
  %v1947 = vrsqrt.pop %v1915
  %v1948 = vrsqrt.pop %v1916
  %v1949 = vrsqrt.pop %v1917
  %v1950 = vrsqrt.pop %v1918
  %v1951 = vrsqrt.pop %v1919
  %v1952 = vrsqrt.pop %v1920
  %v1953 = vrsqrt.pop %v1921
  %v1954 = vrsqrt.pop %v1922
  %v1955 = vrsqrt.pop %v1923
  %v1956 = vrsqrt.pop %v1924
  %v1957 = vrsqrt.pop %v1925
  %v1958 = vrsqrt.pop %v1926
  %v1959 = vrsqrt.pop %v1927
  %v1960 = vrsqrt.pop %v1928
  %v1961 = vrsqrt.pop %v1929
  %v1962 = vrsqrt.pop %v1930
  %v1963 = vrsqrt.pop %v1931
  %v1964 = vrsqrt.pop %v1932
  %v1965 = vrsqrt.pop %v1933
  %v1966 = vrsqrt.pop %v1934
  %v1967 = vrsqrt.pop %v1935
  %v1968 = vrsqrt.pop %v1936
  %v1969 = vrsqrt.pop %v1937
  %v1970 = vrsqrt.pop %v1938
  %v1971 = vrsqrt.pop %v1939
  %v1972 = vrsqrt.pop %v1940
  %v1973 = vmul.f32 %v1877, %v1941
  %v1974 = vmul.f32 %v1878, %v1942
  %v1975 = vmul.f32 %v1879, %v1943
  %v1976 = vmul.f32 %v1880, %v1944
  %v1977 = vmul.f32 %v1881, %v1945
  %v1978 = vmul.f32 %v1882, %v1946
  %v1979 = vmul.f32 %v1883, %v1947
  %v1980 = vmul.f32 %v1884, %v1948
  %v1981 = vmul.f32 %v1885, %v1949
  %v1982 = vmul.f32 %v1886, %v1950
  %v1983 = vmul.f32 %v1887, %v1951
  %v1984 = vmul.f32 %v1888, %v1952
  %v1985 = vmul.f32 %v1889, %v1953
  %v1986 = vmul.f32 %v1890, %v1954
  %v1987 = vmul.f32 %v1891, %v1955
  %v1988 = vmul.f32 %v1892, %v1956
  %v1989 = vmul.f32 %v1893, %v1957
  %v1990 = vmul.f32 %v1894, %v1958
  %v1991 = vmul.f32 %v1895, %v1959
  %v1992 = vmul.f32 %v1896, %v1960
  %v1993 = vmul.f32 %v1897, %v1961
  %v1994 = vmul.f32 %v1898, %v1962
  %v1995 = vmul.f32 %v1899, %v1963
  %v1996 = vmul.f32 %v1900, %v1964
  %v1997 = vmul.f32 %v1901, %v1965
  %v1998 = vmul.f32 %v1902, %v1966
  %v1999 = vmul.f32 %v1903, %v1967
  %v2000 = vmul.f32 %v1904, %v1968
  %v2001 = vmul.f32 %v1905, %v1969
  %v2002 = vmul.f32 %v1906, %v1970
  %v2003 = vmul.f32 %v1907, %v1971
  %v2004 = vmul.f32 %v1908, %v1972
  %v2006 = vlaneseq
  %v2007 = vshrl.u32 %v2006, 7
  %v2008 = vsub.s32 0, %v2007
  %v2009 = vrot.slane %v1554, %v2008
  %v2011 = vmul.f32 %v1973, %v2009
  %v2012 = vmul.f32 %v1974, %v2009
  %v2013 = vmul.f32 %v1975, %v2009
  %v2014 = vmul.f32 %v1976, %v2009
  %v2015 = vmul.f32 %v1977, %v2009
  %v2016 = vmul.f32 %v1978, %v2009
  %v2017 = vmul.f32 %v1979, %v2009
  %v2018 = vmul.f32 %v1980, %v2009
  %v2019 = vmul.f32 %v1981, %v2009
  %v2020 = vmul.f32 %v1982, %v2009
  %v2021 = vmul.f32 %v1983, %v2009
  %v2022 = vmul.f32 %v1984, %v2009
  %v2023 = vmul.f32 %v1985, %v2009
  %v2024 = vmul.f32 %v1986, %v2009
  %v2025 = vmul.f32 %v1987, %v2009
  %v2026 = vmul.f32 %v1988, %v2009
  %v2027 = vmul.f32 %v1989, %v2009
  %v2028 = vmul.f32 %v1990, %v2009
  %v2029 = vmul.f32 %v1991, %v2009
  %v2030 = vmul.f32 %v1992, %v2009
  %v2031 = vmul.f32 %v1993, %v2009
  %v2032 = vmul.f32 %v1994, %v2009
  %v2033 = vmul.f32 %v1995, %v2009
  %v2034 = vmul.f32 %v1996, %v2009
  %v2035 = vmul.f32 %v1997, %v2009
  %v2036 = vmul.f32 %v1998, %v2009
  %v2037 = vmul.f32 %v1999, %v2009
  %v2038 = vmul.f32 %v2000, %v2009
  %v2039 = vmul.f32 %v2001, %v2009
  %v2040 = vmul.f32 %v2002, %v2009
  %v2041 = vmul.f32 %v2003, %v2009
  %v2042 = vmul.f32 %v2004, %v2009
  %v2044 = vlaneseq
  %v2045 = vshrl.u32 %v2044, 7
  %v2046 = vsub.s32 0, %v2045
  %v2047 = vrot.slane %v1555, %v2046
  %v2049 = vadd.f32 %v2011, %v2047
  %v2050 = vadd.f32 %v2012, %v2047
  %v2051 = vadd.f32 %v2013, %v2047
  %v2052 = vadd.f32 %v2014, %v2047
  %v2053 = vadd.f32 %v2015, %v2047
  %v2054 = vadd.f32 %v2016, %v2047
  %v2055 = vadd.f32 %v2017, %v2047
  %v2056 = vadd.f32 %v2018, %v2047
  %v2057 = vadd.f32 %v2019, %v2047
  %v2058 = vadd.f32 %v2020, %v2047
  %v2059 = vadd.f32 %v2021, %v2047
  %v2060 = vadd.f32 %v2022, %v2047
  %v2061 = vadd.f32 %v2023, %v2047
  %v2062 = vadd.f32 %v2024, %v2047
  %v2063 = vadd.f32 %v2025, %v2047
  %v2064 = vadd.f32 %v2026, %v2047
  %v2065 = vadd.f32 %v2027, %v2047
  %v2066 = vadd.f32 %v2028, %v2047
  %v2067 = vadd.f32 %v2029, %v2047
  %v2068 = vadd.f32 %v2030, %v2047
  %v2069 = vadd.f32 %v2031, %v2047
  %v2070 = vadd.f32 %v2032, %v2047
  %v2071 = vadd.f32 %v2033, %v2047
  %v2072 = vadd.f32 %v2034, %v2047
  %v2073 = vadd.f32 %v2035, %v2047
  %v2074 = vadd.f32 %v2036, %v2047
  %v2075 = vadd.f32 %v2037, %v2047
  %v2076 = vadd.f32 %v2038, %v2047
  %v2077 = vadd.f32 %v2039, %v2047
  %v2078 = vadd.f32 %v2040, %v2047
  %v2079 = vadd.f32 %v2041, %v2047
  %v2080 = vadd.f32 %v2042, %v2047
  %v2081 = vmax.f32 %v2049, 0.0
  %v2082 = vmax.f32 %v2050, 0.0
  %v2083 = vmax.f32 %v2051, 0.0
  %v2084 = vmax.f32 %v2052, 0.0
  %v2085 = vmax.f32 %v2053, 0.0
  %v2086 = vmax.f32 %v2054, 0.0
  %v2087 = vmax.f32 %v2055, 0.0
  %v2088 = vmax.f32 %v2056, 0.0
  %v2089 = vmax.f32 %v2057, 0.0
  %v2090 = vmax.f32 %v2058, 0.0
  %v2091 = vmax.f32 %v2059, 0.0
  %v2092 = vmax.f32 %v2060, 0.0
  %v2093 = vmax.f32 %v2061, 0.0
  %v2094 = vmax.f32 %v2062, 0.0
  %v2095 = vmax.f32 %v2063, 0.0
  %v2096 = vmax.f32 %v2064, 0.0
  %v2097 = vmax.f32 %v2065, 0.0
  %v2098 = vmax.f32 %v2066, 0.0
  %v2099 = vmax.f32 %v2067, 0.0
  %v2100 = vmax.f32 %v2068, 0.0
  %v2101 = vmax.f32 %v2069, 0.0
  %v2102 = vmax.f32 %v2070, 0.0
  %v2103 = vmax.f32 %v2071, 0.0
  %v2104 = vmax.f32 %v2072, 0.0
  %v2105 = vmax.f32 %v2073, 0.0
  %v2106 = vmax.f32 %v2074, 0.0
  %v2107 = vmax.f32 %v2075, 0.0
  %v2108 = vmax.f32 %v2076, 0.0
  %v2109 = vmax.f32 %v2077, 0.0
  %v2110 = vmax.f32 %v2078, 0.0
  %v2111 = vmax.f32 %v2079, 0.0
  %v2112 = vmax.f32 %v2080, 0.0
  %v2113 = vpack.c.bf16 %v2082, %v2081
  %v2114 = vpack.c.bf16 %v2084, %v2083
  %v2115 = vpack.c.bf16 %v2086, %v2085
  %v2116 = vpack.c.bf16 %v2088, %v2087
  %v2117 = vpack.c.bf16 %v2090, %v2089
  %v2118 = vpack.c.bf16 %v2092, %v2091
  %v2119 = vpack.c.bf16 %v2094, %v2093
  %v2120 = vpack.c.bf16 %v2096, %v2095
  %v2121 = vpack.c.bf16 %v2098, %v2097
  %v2122 = vpack.c.bf16 %v2100, %v2099
  %v2123 = vpack.c.bf16 %v2102, %v2101
  %v2124 = vpack.c.bf16 %v2104, %v2103
  %v2125 = vpack.c.bf16 %v2106, %v2105
  %v2126 = vpack.c.bf16 %v2108, %v2107
  %v2127 = vpack.c.bf16 %v2110, %v2109
  %v2128 = vpack.c.bf16 %v2112, %v2111
  %v2129 = vld [vmem:[%s7] sm:$0xf]
  %v2130 = vld [vmem:[%s7 + $0x4] sm:$0xf]
  %v2131 = vld [vmem:[%s7 + $0x8] sm:$0xf]
  %v2132 = vld [vmem:[%s7 + $0xc] sm:$0xf]
  %v2133 = vld [vmem:[%s7 + $0x10] sm:$0xf]
  %v2134 = vld [vmem:[%s7 + $0x14] sm:$0xf]
  %v2135 = vld [vmem:[%s7 + $0x18] sm:$0xf]
  %v2136 = vld [vmem:[%s7 + $0x1c] sm:$0xf]
  %v2137 = vld [vmem:[%s7 + $0x20] sm:$0xf]
  %v2138 = vld [vmem:[%s7 + $0x24] sm:$0xf]
  %v2139 = vld [vmem:[%s7 + $0x28] sm:$0xf]
  %v2140 = vld [vmem:[%s7 + $0x2c] sm:$0xf]
  %v2141 = vld [vmem:[%s7 + $0x30] sm:$0xf]
  %v2142 = vld [vmem:[%s7 + $0x34] sm:$0xf]
  %v2143 = vld [vmem:[%s7 + $0x38] sm:$0xf]
  %v2144 = vld [vmem:[%s7 + $0x3c] sm:$0xf]
  %v2145 = vld [vmem:[%s8] sm:$0x1]
  %v2147 = vlaneseq
  %v2148 = vshrl.u32 %v2147, 7
  %v2149 = vsub.s32 0, %v2148
  %v2150 = vrot.slane %v2145, %v2149
  %v2168 = vunpack.c.l.b16 %v2129
  %v2169 = vunpack.c.l.b16 %v2130
  %v2170 = vunpack.c.l.b16 %v2131
  %v2171 = vunpack.c.l.b16 %v2132
  %v2172 = vunpack.c.l.b16 %v2133
  %v2173 = vunpack.c.l.b16 %v2134
  %v2174 = vunpack.c.l.b16 %v2135
  %v2175 = vunpack.c.l.b16 %v2136
  %v2176 = vunpack.c.l.b16 %v2137
  %v2177 = vunpack.c.l.b16 %v2138
  %v2178 = vunpack.c.l.b16 %v2139
  %v2179 = vunpack.c.l.b16 %v2140
  %v2180 = vunpack.c.l.b16 %v2141
  %v2181 = vunpack.c.l.b16 %v2142
  %v2182 = vunpack.c.l.b16 %v2143
  %v2183 = vunpack.c.l.b16 %v2144
  %v2184 = vpack.c.b16 %v2169, %v2168
  %v2185 = vpack.c.b16 %v2171, %v2170
  %v2186 = vpack.c.b16 %v2173, %v2172
  %v2187 = vpack.c.b16 %v2175, %v2174
  %v2188 = vpack.c.b16 %v2177, %v2176
  %v2189 = vpack.c.b16 %v2179, %v2178
  %v2190 = vpack.c.b16 %v2181, %v2180
  %v2191 = vpack.c.b16 %v2183, %v2182
  %2200 = vmatprep.subr.bf16.mxu0 0
  %2201 = vmatpush1.bf16.msra.mxu0 %v2184
  %2202 = vmatprep.subr.bf16.mxu0 0
  %2203 = vmatpush1.bf16.msra.mxu0 %v2185
  %2204 = vmatprep.subr.bf16.mxu0 0
  %2205 = vmatpush1.bf16.msra.mxu0 %v2186
  %2206 = vmatprep.subr.bf16.mxu0 0
  %2207 = vmatpush1.bf16.msra.mxu0 %v2187
  %2208 = vmatprep.subr.bf16.mxu0 0
  %2209 = vmatpush1.bf16.msra.mxu0 %v2188
  %2210 = vmatprep.subr.bf16.mxu0 0
  %2211 = vmatpush1.bf16.msra.mxu0 %v2189
  %2212 = vmatprep.subr.bf16.mxu0 0
  %2213 = vmatpush1.bf16.msra.mxu0 %v2190
  %2214 = vmatprep.subr.bf16.mxu0 0
  %2215 = vmatpush1.bf16.msra.mxu0 %v2191
  %2216 = vmatprep.subr.bf16.mxu0 0
  %2217 = vmatpush1.bf16.msra.mxu0 0
  %2218 = vmatprep.subr.bf16.mxu0 0
  %2219 = vmatpush1.bf16.msra.mxu0 0
  %2220 = vmatprep.subr.bf16.mxu0 0
  %2221 = vmatpush1.bf16.msra.mxu0 0
  %2222 = vmatprep.subr.bf16.mxu0 0
  %2223 = vmatpush1.bf16.msra.mxu0 0
  %2224 = vmatprep.subr.bf16.mxu0 0
  %2225 = vmatpush1.bf16.msra.mxu0 0
  %2226 = vmatprep.subr.bf16.mxu0 0
  %2227 = vmatpush1.bf16.msra.mxu0 0
  %2228 = vmatprep.subr.bf16.mxu0 0
  %2229 = vmatpush1.bf16.msra.mxu0 0
  %2230 = vmatprep.subr.bf16.mxu0 0
  %2231 = vmatpush1.bf16.msra.mxu0 0
  %2232 = vmatprep.mubr.bf16.mxu0 0
  %2233 = vmatmul.mubr.bf16.gmra.mrb[0].mxu0 %v2113
  %v2234 = vpop.f32.mrb[0].mxu0
  %v2235 = vadd.f32 %v2150, %v2234
  %v2236 = vpop.f32.mrb[0].mxu0
  %v2237 = vpop.f32.mrb[0].mxu0
  %v2238 = vadd.f32 %v2150, %v2237
  %v2239 = vpop.f32.mrb[0].mxu0
  %2240 = vmatprep.mubr.bf16.mxu0 0
  %2241 = vmatmul.mubr.bf16.gmra.mrb[0].mxu0 %v2114
  %v2242 = vpop.f32.mrb[0].mxu0
  %v2243 = vadd.f32 %v2150, %v2242
  %v2244 = vpop.f32.mrb[0].mxu0
  %v2245 = vpop.f32.mrb[0].mxu0
  %v2246 = vadd.f32 %v2150, %v2245
  %v2247 = vpop.f32.mrb[0].mxu0
  %2248 = vmatprep.mubr.bf16.mxu0 0
  %2249 = vmatmul.mubr.bf16.gmra.mrb[0].mxu0 %v2115
  %v2250 = vpop.f32.mrb[0].mxu0
  %v2251 = vadd.f32 %v2150, %v2250
  %v2252 = vpop.f32.mrb[0].mxu0
  %v2253 = vpop.f32.mrb[0].mxu0
  %v2254 = vadd.f32 %v2150, %v2253
  %v2255 = vpop.f32.mrb[0].mxu0
  %2256 = vmatprep.mubr.bf16.mxu0 0
  %2257 = vmatmul.mubr.bf16.gmra.mrb[0].mxu0 %v2116
  %v2258 = vpop.f32.mrb[0].mxu0
  %v2259 = vadd.f32 %v2150, %v2258
  %v2260 = vpop.f32.mrb[0].mxu0
  %v2261 = vpop.f32.mrb[0].mxu0
  %v2262 = vadd.f32 %v2150, %v2261
  %v2263 = vpop.f32.mrb[0].mxu0
  %2264 = vmatprep.mubr.bf16.mxu0 0
  %2265 = vmatmul.mubr.bf16.gmra.mrb[0].mxu0 %v2117
  %v2266 = vpop.f32.mrb[0].mxu0
  %v2267 = vadd.f32 %v2150, %v2266
  %v2268 = vpop.f32.mrb[0].mxu0
  %v2269 = vpop.f32.mrb[0].mxu0
  %v2270 = vadd.f32 %v2150, %v2269
  %v2271 = vpop.f32.mrb[0].mxu0
  %2272 = vmatprep.mubr.bf16.mxu0 0
  %2273 = vmatmul.mubr.bf16.gmra.mrb[0].mxu0 %v2118
  %v2274 = vpop.f32.mrb[0].mxu0
  %v2275 = vadd.f32 %v2150, %v2274
  %v2276 = vpop.f32.mrb[0].mxu0
  %v2277 = vpop.f32.mrb[0].mxu0
  %v2278 = vadd.f32 %v2150, %v2277
  %v2279 = vpop.f32.mrb[0].mxu0
  %2280 = vmatprep.mubr.bf16.mxu0 0
  %2281 = vmatmul.mubr.bf16.gmra.mrb[0].mxu0 %v2119
  %v2282 = vpop.f32.mrb[0].mxu0
  %v2283 = vadd.f32 %v2150, %v2282
  %v2284 = vpop.f32.mrb[0].mxu0
  %v2285 = vpop.f32.mrb[0].mxu0
  %v2286 = vadd.f32 %v2150, %v2285
  %v2287 = vpop.f32.mrb[0].mxu0
  %2288 = vmatprep.mubr.bf16.mxu0 0
  %2289 = vmatmul.mubr.bf16.gmra.mrb[0].mxu0 %v2120
  %v2290 = vpop.f32.mrb[0].mxu0
  %v2291 = vadd.f32 %v2150, %v2290
  %v2292 = vpop.f32.mrb[0].mxu0
  %v2293 = vpop.f32.mrb[0].mxu0
  %v2294 = vadd.f32 %v2150, %v2293
  %v2295 = vpop.f32.mrb[0].mxu0
  %2296 = vmatprep.mubr.bf16.mxu0 0
  %2297 = vmatmul.mubr.bf16.gmra.mrb[0].mxu0 %v2121
  %v2298 = vpop.f32.mrb[0].mxu0
  %v2299 = vadd.f32 %v2150, %v2298
  %v2300 = vpop.f32.mrb[0].mxu0
  %v2301 = vpop.f32.mrb[0].mxu0
  %v2302 = vadd.f32 %v2150, %v2301
  %v2303 = vpop.f32.mrb[0].mxu0
  %2304 = vmatprep.mubr.bf16.mxu0 0
  %2305 = vmatmul.mubr.bf16.gmra.mrb[0].mxu0 %v2122
  %v2306 = vpop.f32.mrb[0].mxu0
  %v2307 = vadd.f32 %v2150, %v2306
  %v2308 = vpop.f32.mrb[0].mxu0
  %v2309 = vpop.f32.mrb[0].mxu0
  %v2310 = vadd.f32 %v2150, %v2309
  %v2311 = vpop.f32.mrb[0].mxu0
  %2312 = vmatprep.mubr.bf16.mxu0 0
  %2313 = vmatmul.mubr.bf16.gmra.mrb[0].mxu0 %v2123
  %v2314 = vpop.f32.mrb[0].mxu0
  %v2315 = vadd.f32 %v2150, %v2314
  %v2316 = vpop.f32.mrb[0].mxu0
  %v2317 = vpop.f32.mrb[0].mxu0
  %v2318 = vadd.f32 %v2150, %v2317
  %v2319 = vpop.f32.mrb[0].mxu0
  %2320 = vmatprep.mubr.bf16.mxu0 0
  %2321 = vmatmul.mubr.bf16.gmra.mrb[0].mxu0 %v2124
  %v2322 = vpop.f32.mrb[0].mxu0
  %v2323 = vadd.f32 %v2150, %v2322
  %v2324 = vpop.f32.mrb[0].mxu0
  %v2325 = vpop.f32.mrb[0].mxu0
  %v2326 = vadd.f32 %v2150, %v2325
  %v2327 = vpop.f32.mrb[0].mxu0
  %2328 = vmatprep.mubr.bf16.mxu0 0
  %2329 = vmatmul.mubr.bf16.gmra.mrb[0].mxu0 %v2125
  %v2330 = vpop.f32.mrb[0].mxu0
  %v2331 = vadd.f32 %v2150, %v2330
  %v2332 = vpop.f32.mrb[0].mxu0
  %v2333 = vpop.f32.mrb[0].mxu0
  %v2334 = vadd.f32 %v2150, %v2333
  %v2335 = vpop.f32.mrb[0].mxu0
  %2336 = vmatprep.mubr.bf16.mxu0 0
  %2337 = vmatmul.mubr.bf16.gmra.mrb[0].mxu0 %v2126
  %v2338 = vpop.f32.mrb[0].mxu0
  %v2339 = vadd.f32 %v2150, %v2338
  %v2340 = vpop.f32.mrb[0].mxu0
  %v2341 = vpop.f32.mrb[0].mxu0
  %v2342 = vadd.f32 %v2150, %v2341
  %v2343 = vpop.f32.mrb[0].mxu0
  %2344 = vmatprep.mubr.bf16.mxu0 0
  %2345 = vmatmul.mubr.bf16.gmra.mrb[0].mxu0 %v2127
  %v2346 = vpop.f32.mrb[0].mxu0
  %v2347 = vadd.f32 %v2150, %v2346
  %v2348 = vpop.f32.mrb[0].mxu0
  %v2349 = vpop.f32.mrb[0].mxu0
  %v2350 = vadd.f32 %v2150, %v2349
  %v2351 = vpop.f32.mrb[0].mxu0
  %2352 = vmatprep.mubr.bf16.mxu0 0
  %2353 = vmatmul.mubr.bf16.gmra.mrb[0].mxu0 %v2128
  %v2354 = vpop.f32.mrb[0].mxu0
  %v2355 = vadd.f32 %v2150, %v2354
  %v2356 = vpop.f32.mrb[0].mxu0
  %v2357 = vpop.f32.mrb[0].mxu0
  %v2358 = vadd.f32 %v2150, %v2357
  %v2359 = vpop.f32.mrb[0].mxu0
  %2360 = vdwg.mxu0
  %v2361 = vadd.f32 %v2235, %v1274
  %v2362 = vadd.f32 %v2238, %v1275
  %v2363 = vadd.f32 %v2243, %v1276
  %v2364 = vadd.f32 %v2246, %v1277
  %v2365 = vadd.f32 %v2251, %v1278
  %v2366 = vadd.f32 %v2254, %v1279
  %v2367 = vadd.f32 %v2259, %v1280
  %v2368 = vadd.f32 %v2262, %v1281
  %v2369 = vadd.f32 %v2267, %v1282
  %v2370 = vadd.f32 %v2270, %v1283
  %v2371 = vadd.f32 %v2275, %v1284
  %v2372 = vadd.f32 %v2278, %v1285
  %v2373 = vadd.f32 %v2283, %v1286
  %v2374 = vadd.f32 %v2286, %v1287
  %v2375 = vadd.f32 %v2291, %v1288
  %v2376 = vadd.f32 %v2294, %v1289
  %v2377 = vadd.f32 %v2299, %v1290
  %v2378 = vadd.f32 %v2302, %v1291
  %v2379 = vadd.f32 %v2307, %v1292
  %v2380 = vadd.f32 %v2310, %v1293
  %v2381 = vadd.f32 %v2315, %v1294
  %v2382 = vadd.f32 %v2318, %v1295
  %v2383 = vadd.f32 %v2323, %v1296
  %v2384 = vadd.f32 %v2326, %v1297
  %v2385 = vadd.f32 %v2331, %v1298
  %v2386 = vadd.f32 %v2334, %v1299
  %v2387 = vadd.f32 %v2339, %v1300
  %v2388 = vadd.f32 %v2342, %v1301
  %v2389 = vadd.f32 %v2347, %v1302
  %v2390 = vadd.f32 %v2350, %v1303
  %v2391 = vadd.f32 %v2355, %v1304
  %v2392 = vadd.f32 %v2358, %v1305
  %2393 = vset.pattern.permute.xlu0 6
  %2394 = vperm.xlu0 %2393, %v53
  %v2395 = vpop.permute.xlu0 %2394
  %2397 = vset.pattern.permute.xlu0 6
  %2398 = vperm.xlu0 %2397, %v54
  %v2399 = vpop.permute.xlu0 %2398
  %2401 = vset.pattern.permute.xlu0 6
  %2402 = vperm.xlu0 %2401, %v55
  %v2403 = vpop.permute.xlu0 %2402
  %2405 = vset.pattern.permute.xlu0 6
  %2406 = vperm.xlu0 %2405, %v56
  %v2407 = vpop.permute.xlu0 %2406
  %2409 = vset.pattern.permute.xlu0 6
  %2410 = vperm.xlu0 %2409, %v57
  %v2411 = vpop.permute.xlu0 %2410
  %2413 = vset.pattern.permute.xlu0 6
  %2414 = vperm.xlu0 %2413, %v58
  %v2415 = vpop.permute.xlu0 %2414
  %2417 = vset.pattern.permute.xlu0 6
  %2418 = vperm.xlu0 %2417, %v59
  %v2419 = vpop.permute.xlu0 %2418
  %2421 = vset.pattern.permute.xlu0 6
  %2422 = vperm.xlu0 %2421, %v60
  %v2423 = vpop.permute.xlu0 %2422
  %2425 = vset.pattern.permute.xlu0 6
  %2426 = vperm.xlu0 %2425, %v61
  %v2427 = vpop.permute.xlu0 %2426
  %2429 = vset.pattern.permute.xlu0 6
  %2430 = vperm.xlu0 %2429, %v62
  %v2431 = vpop.permute.xlu0 %2430
  %2433 = vset.pattern.permute.xlu0 6
  %2434 = vperm.xlu0 %2433, %v63
  %v2435 = vpop.permute.xlu0 %2434
  %2437 = vset.pattern.permute.xlu0 6
  %2438 = vperm.xlu0 %2437, %v64
  %v2439 = vpop.permute.xlu0 %2438
  %2441 = vset.pattern.permute.xlu0 6
  %2442 = vperm.xlu0 %2441, %v65
  %v2443 = vpop.permute.xlu0 %2442
  %2445 = vset.pattern.permute.xlu0 6
  %2446 = vperm.xlu0 %2445, %v66
  %v2447 = vpop.permute.xlu0 %2446
  %2449 = vset.pattern.permute.xlu0 6
  %2450 = vperm.xlu0 %2449, %v67
  %v2451 = vpop.permute.xlu0 %2450
  %2453 = vset.pattern.permute.xlu0 6
  %2454 = vperm.xlu0 %2453, %v68
  %v2455 = vpop.permute.xlu0 %2454
  %2457 = vset.pattern.permute.xlu0 6
  %2458 = vperm.xlu0 %2457, %v69
  %v2459 = vpop.permute.xlu0 %2458
  %2461 = vset.pattern.permute.xlu0 6
  %2462 = vperm.xlu0 %2461, %v70
  %v2463 = vpop.permute.xlu0 %2462
  %2465 = vset.pattern.permute.xlu0 6
  %2466 = vperm.xlu0 %2465, %v71
  %v2467 = vpop.permute.xlu0 %2466
  %2469 = vset.pattern.permute.xlu0 6
  %2470 = vperm.xlu0 %2469, %v72
  %v2471 = vpop.permute.xlu0 %2470
  %2473 = vset.pattern.permute.xlu0 6
  %2474 = vperm.xlu0 %2473, %v73
  %v2475 = vpop.permute.xlu0 %2474
  %2477 = vset.pattern.permute.xlu0 6
  %2478 = vperm.xlu0 %2477, %v74
  %v2479 = vpop.permute.xlu0 %2478
  %2481 = vset.pattern.permute.xlu0 6
  %2482 = vperm.xlu0 %2481, %v75
  %v2483 = vpop.permute.xlu0 %2482
  %2485 = vset.pattern.permute.xlu0 6
  %2486 = vperm.xlu0 %2485, %v76
  %v2487 = vpop.permute.xlu0 %2486
  %2489 = vset.pattern.permute.xlu0 6
  %2490 = vperm.xlu0 %2489, %v77
  %v2491 = vpop.permute.xlu0 %2490
  %2493 = vset.pattern.permute.xlu0 6
  %2494 = vperm.xlu0 %2493, %v78
  %v2495 = vpop.permute.xlu0 %2494
  %2497 = vset.pattern.permute.xlu0 6
  %2498 = vperm.xlu0 %2497, %v79
  %v2499 = vpop.permute.xlu0 %2498
  %2501 = vset.pattern.permute.xlu0 6
  %2502 = vperm.xlu0 %2501, %v80
  %v2503 = vpop.permute.xlu0 %2502
  %2505 = vset.pattern.permute.xlu0 6
  %2506 = vperm.xlu0 %2505, %v81
  %v2507 = vpop.permute.xlu0 %2506
  %2509 = vset.pattern.permute.xlu0 6
  %2510 = vperm.xlu0 %2509, %v82
  %v2511 = vpop.permute.xlu0 %2510
  %2513 = vset.pattern.permute.xlu0 6
  %2514 = vperm.xlu0 %2513, %v83
  %v2515 = vpop.permute.xlu0 %2514
  %2517 = vset.pattern.permute.xlu0 6
  %2518 = vperm.xlu0 %2517, %v84
  %v2519 = vpop.permute.xlu0 %2518
  %v2521 = vadd.f32 %v2361, %v2395
  %v2522 = vadd.f32 %v2362, %v2399
  %v2523 = vadd.f32 %v2363, %v2403
  %v2524 = vadd.f32 %v2364, %v2407
  %v2525 = vadd.f32 %v2365, %v2411
  %v2526 = vadd.f32 %v2366, %v2415
  %v2527 = vadd.f32 %v2367, %v2419
  %v2528 = vadd.f32 %v2368, %v2423
  %v2529 = vadd.f32 %v2369, %v2427
  %v2530 = vadd.f32 %v2370, %v2431
  %v2531 = vadd.f32 %v2371, %v2435
  %v2532 = vadd.f32 %v2372, %v2439
  %v2533 = vadd.f32 %v2373, %v2443
  %v2534 = vadd.f32 %v2374, %v2447
  %v2535 = vadd.f32 %v2375, %v2451
  %v2536 = vadd.f32 %v2376, %v2455
  %v2537 = vadd.f32 %v2377, %v2459
  %v2538 = vadd.f32 %v2378, %v2463
  %v2539 = vadd.f32 %v2379, %v2467
  %v2540 = vadd.f32 %v2380, %v2471
  %v2541 = vadd.f32 %v2381, %v2475
  %v2542 = vadd.f32 %v2382, %v2479
  %v2543 = vadd.f32 %v2383, %v2483
  %v2544 = vadd.f32 %v2384, %v2487
  %v2545 = vadd.f32 %v2385, %v2491
  %v2546 = vadd.f32 %v2386, %v2495
  %v2547 = vadd.f32 %v2387, %v2499
  %v2548 = vadd.f32 %v2388, %v2503
  %v2549 = vadd.f32 %v2389, %v2507
  %v2550 = vadd.f32 %v2390, %v2511
  %v2551 = vadd.f32 %v2391, %v2515
  %v2552 = vadd.f32 %v2392, %v2519
  %v2553 = vmax.f32 %v2521, %v2522
  %v2554 = vmax.f32 %v2553, %v2523
  %v2555 = vmax.f32 %v2554, %v2524
  %v2556 = vrot.slane %v2555, 4
  %v2557 = vmax.f32 %v2555, %v2556
  %v2558 = vrot.slane %v2557, 2
  %v2559 = vmax.f32 %v2557, %v2558
  %v2560 = vrot.slane %v2559, 1
  %v2561 = vmax.f32 %v2559, %v2560
  %v2562 = vmax.f32 %v2525, %v2526
  %v2563 = vmax.f32 %v2562, %v2527
  %v2564 = vmax.f32 %v2563, %v2528
  %v2565 = vrot.slane %v2564, 4
  %v2566 = vmax.f32 %v2564, %v2565
  %v2567 = vrot.slane %v2566, 2
  %v2568 = vmax.f32 %v2566, %v2567
  %v2569 = vrot.slane %v2568, 1
  %v2570 = vmax.f32 %v2568, %v2569
  %v2571 = vmax.f32 %v2529, %v2530
  %v2572 = vmax.f32 %v2571, %v2531
  %v2573 = vmax.f32 %v2572, %v2532
  %v2574 = vrot.slane %v2573, 4
  %v2575 = vmax.f32 %v2573, %v2574
  %v2576 = vrot.slane %v2575, 2
  %v2577 = vmax.f32 %v2575, %v2576
  %v2578 = vrot.slane %v2577, 1
  %v2579 = vmax.f32 %v2577, %v2578
  %v2580 = vmax.f32 %v2533, %v2534
  %v2581 = vmax.f32 %v2580, %v2535
  %v2582 = vmax.f32 %v2581, %v2536
  %v2583 = vrot.slane %v2582, 4
  %v2584 = vmax.f32 %v2582, %v2583
  %v2585 = vrot.slane %v2584, 2
  %v2586 = vmax.f32 %v2584, %v2585
  %v2587 = vrot.slane %v2586, 1
  %v2588 = vmax.f32 %v2586, %v2587
  %v2589 = vmax.f32 %v2537, %v2538
  %v2590 = vmax.f32 %v2589, %v2539
  %v2591 = vmax.f32 %v2590, %v2540
  %v2592 = vrot.slane %v2591, 4
  %v2593 = vmax.f32 %v2591, %v2592
  %v2594 = vrot.slane %v2593, 2
  %v2595 = vmax.f32 %v2593, %v2594
  %v2596 = vrot.slane %v2595, 1
  %v2597 = vmax.f32 %v2595, %v2596
  %v2598 = vmax.f32 %v2541, %v2542
  %v2599 = vmax.f32 %v2598, %v2543
  %v2600 = vmax.f32 %v2599, %v2544
  %v2601 = vrot.slane %v2600, 4
  %v2602 = vmax.f32 %v2600, %v2601
  %v2603 = vrot.slane %v2602, 2
  %v2604 = vmax.f32 %v2602, %v2603
  %v2605 = vrot.slane %v2604, 1
  %v2606 = vmax.f32 %v2604, %v2605
  %v2607 = vmax.f32 %v2545, %v2546
  %v2608 = vmax.f32 %v2607, %v2547
  %v2609 = vmax.f32 %v2608, %v2548
  %v2610 = vrot.slane %v2609, 4
  %v2611 = vmax.f32 %v2609, %v2610
  %v2612 = vrot.slane %v2611, 2
  %v2613 = vmax.f32 %v2611, %v2612
  %v2614 = vrot.slane %v2613, 1
  %v2615 = vmax.f32 %v2613, %v2614
  %v2616 = vmax.f32 %v2549, %v2550
  %v2617 = vmax.f32 %v2616, %v2551
  %v2618 = vmax.f32 %v2617, %v2552
  %v2619 = vrot.slane %v2618, 4
  %v2620 = vmax.f32 %v2618, %v2619
  %v2621 = vrot.slane %v2620, 2
  %v2622 = vmax.f32 %v2620, %v2621
  %v2623 = vrot.slane %v2622, 1
  %v2624 = vmax.f32 %v2622, %v2623
  %v2625 = vpack.c.bf16 %v2561, %v2561
  %v2626 = vpack.c.bf16 %v2570, %v2570
  %v2627 = vpack.c.bf16 %v2579, %v2579
  %v2628 = vpack.c.bf16 %v2588, %v2588
  %v2629 = vpack.c.bf16 %v2597, %v2597
  %v2630 = vpack.c.bf16 %v2606, %v2606
  %v2631 = vpack.c.bf16 %v2615, %v2615
  %v2632 = vpack.c.bf16 %v2624, %v2624
  %v2633 = vld [vmem:[%s9] sm:$0xf]
  %v2634 = vld [vmem:[%s9 + $0x4] sm:$0xf]
  %v2635 = vld [vmem:[%s9 + $0x8] sm:$0xf]
  %v2636 = vld [vmem:[%s9 + $0xc] sm:$0xf]
  %v2637 = vld [vmem:[%s9 + $0x10] sm:$0xf]
  %v2638 = vld [vmem:[%s9 + $0x14] sm:$0xf]
  %v2639 = vld [vmem:[%s9 + $0x18] sm:$0xf]
  %v2640 = vld [vmem:[%s9 + $0x1c] sm:$0xf]
  %v2641 = vld [vmem:[%s9 + $0x20] sm:$0xf]
  %v2642 = vld [vmem:[%s9 + $0x24] sm:$0xf]
  %v2643 = vld [vmem:[%s9 + $0x28] sm:$0xf]
  %v2644 = vld [vmem:[%s9 + $0x2c] sm:$0xf]
  %v2645 = vld [vmem:[%s9 + $0x30] sm:$0xf]
  %v2646 = vld [vmem:[%s9 + $0x34] sm:$0xf]
  %v2647 = vld [vmem:[%s9 + $0x38] sm:$0xf]
  %v2648 = vld [vmem:[%s9 + $0x3c] sm:$0xf]
  %v2649 = vld [vmem:[%s10] sm:$0x1]
  %v2651 = vlaneseq
  %v2652 = vshrl.u32 %v2651, 7
  %v2653 = vsub.s32 0, %v2652
  %v2654 = vrot.slane %v2649, %v2653
  %v2664 = vunpack.c.l.b16 %v2625
  %v2665 = vunpack.c.l.b16 %v2626
  %v2666 = vunpack.c.l.b16 %v2627
  %v2667 = vunpack.c.l.b16 %v2628
  %v2668 = vunpack.c.l.b16 %v2629
  %v2669 = vunpack.c.l.b16 %v2630
  %v2670 = vunpack.c.l.b16 %v2631
  %v2671 = vunpack.c.l.b16 %v2632
  %vm2672 = vcmask 1041409
  %v2673 = vsel %vm2672, %v2665, %v2664
  %vm2674 = vcmask 1042434
  %v2675 = vsel %vm2674, %v2666, %v2673
  %vm2676 = vcmask 1043459
  %v2677 = vsel %vm2676, %v2667, %v2675
  %vm2678 = vcmask 1044484
  %v2679 = vsel %vm2678, %v2668, %v2677
  %vm2680 = vcmask 1045509
  %v2681 = vsel %vm2680, %v2669, %v2679
  %vm2682 = vcmask 1046534
  %v2683 = vsel %vm2682, %v2670, %v2681
  %vm2684 = vcmask 1047559
  %v2685 = vsel %vm2684, %v2671, %v2683
  %v2686 = vpack.c.b16 %v2685, %v2685
  %v2704 = vunpack.c.l.b16 %v2633
  %v2705 = vunpack.c.l.b16 %v2634
  %v2706 = vunpack.c.l.b16 %v2635
  %v2707 = vunpack.c.l.b16 %v2636
  %v2708 = vunpack.c.l.b16 %v2637
  %v2709 = vunpack.c.l.b16 %v2638
  %v2710 = vunpack.c.l.b16 %v2639
  %v2711 = vunpack.c.l.b16 %v2640
  %v2712 = vunpack.c.l.b16 %v2641
  %v2713 = vunpack.c.l.b16 %v2642
  %v2714 = vunpack.c.l.b16 %v2643
  %v2715 = vunpack.c.l.b16 %v2644
  %v2716 = vunpack.c.l.b16 %v2645
  %v2717 = vunpack.c.l.b16 %v2646
  %v2718 = vunpack.c.l.b16 %v2647
  %v2719 = vunpack.c.l.b16 %v2648
  %v2720 = vpack.c.b16 %v2705, %v2704
  %v2721 = vpack.c.b16 %v2707, %v2706
  %v2722 = vpack.c.b16 %v2709, %v2708
  %v2723 = vpack.c.b16 %v2711, %v2710
  %v2724 = vpack.c.b16 %v2713, %v2712
  %v2725 = vpack.c.b16 %v2715, %v2714
  %v2726 = vpack.c.b16 %v2717, %v2716
  %v2727 = vpack.c.b16 %v2719, %v2718
  %2736 = vmatprep.subr.bf16.mxu0 0
  %2737 = vmatpush1.bf16.msra.mxu0 %v2720
  %2738 = vmatprep.subr.bf16.mxu0 0
  %2739 = vmatpush1.bf16.msra.mxu0 %v2721
  %2740 = vmatprep.subr.bf16.mxu0 0
  %2741 = vmatpush1.bf16.msra.mxu0 %v2722
  %2742 = vmatprep.subr.bf16.mxu0 0
  %2743 = vmatpush1.bf16.msra.mxu0 %v2723
  %2744 = vmatprep.subr.bf16.mxu0 0
  %2745 = vmatpush1.bf16.msra.mxu0 %v2724
  %2746 = vmatprep.subr.bf16.mxu0 0
  %2747 = vmatpush1.bf16.msra.mxu0 %v2725
  %2748 = vmatprep.subr.bf16.mxu0 0
  %2749 = vmatpush1.bf16.msra.mxu0 %v2726
  %2750 = vmatprep.subr.bf16.mxu0 0
  %2751 = vmatpush1.bf16.msra.mxu0 %v2727
  %2752 = vmatprep.subr.bf16.mxu0 0
  %2753 = vmatpush1.bf16.msra.mxu0 0
  %2754 = vmatprep.subr.bf16.mxu0 0
  %2755 = vmatpush1.bf16.msra.mxu0 0
  %2756 = vmatprep.subr.bf16.mxu0 0
  %2757 = vmatpush1.bf16.msra.mxu0 0
  %2758 = vmatprep.subr.bf16.mxu0 0
  %2759 = vmatpush1.bf16.msra.mxu0 0
  %2760 = vmatprep.subr.bf16.mxu0 0
  %2761 = vmatpush1.bf16.msra.mxu0 0
  %2762 = vmatprep.subr.bf16.mxu0 0
  %2763 = vmatpush1.bf16.msra.mxu0 0
  %2764 = vmatprep.subr.bf16.mxu0 0
  %2765 = vmatpush1.bf16.msra.mxu0 0
  %2766 = vmatprep.subr.bf16.mxu0 0
  %2767 = vmatpush1.bf16.msra.mxu0 0
  %2768 = vmatprep.mubr.bf16.mxu0 0
  %2769 = vmatmul.mubr.bf16.gmra.mrb[0].mxu0 %v2686
  %v2770 = vpop.f32.mrb[0].mxu0
  %v2771 = vadd.f32 %v2654, %v2770
  %v2772 = vpop.f32.mrb[0].mxu0
  %v2773 = vpop.f32.mrb[0].mxu0
  %v2774 = vpop.f32.mrb[0].mxu0
  %2775 = vdwg.mxu0
  %v2776 = vld [vmem:[%s11] sm:$0x1]
  %v2777 = vld [vmem:[%s12] sm:$0x1]
  %2778 = vadd.xlane.f32.xlu0 %v2771
  %v2779 = vpop.xlane.xlu0 %2778
  %v2780 = vmul.f32 %v2779, %v1620
  %v2781 = vmul.f32 %v2771, %v2771
  %2782 = vadd.xlane.f32.xlu0 %v2781
  %v2783 = vpop.xlane.xlu0 %2782
  %v2784 = vmul.f32 %v2783, %v1620
  %v2785 = vmul.f32 %v2780, %v2780
  %v2786 = vsub.f32 %v2784, %v2785
  %v2787 = vmax.f32 %v2786, 0.0
  %v2788 = vsub.f32 %v2771, %v2780
  %v2789 = vadd.f32 %v2787, 1e-05
  %v2790 = vrsqrt.pop %v2789
  %v2791 = vmul.f32 %v2788, %v2790
  %v2793 = vlaneseq
  %v2794 = vshrl.u32 %v2793, 7
  %v2795 = vsub.s32 0, %v2794
  %v2796 = vrot.slane %v2776, %v2795
  %v2798 = vmul.f32 %v2791, %v2796
  %v2800 = vlaneseq
  %v2801 = vshrl.u32 %v2800, 7
  %v2802 = vsub.s32 0, %v2801
  %v2803 = vrot.slane %v2777, %v2802
  %v2805 = vadd.f32 %v2798, %v2803
  %v2806 = vmax.f32 %v2805, 0.0
  %v2807 = vld [vmem:[%s13] sm:$0xff]
  %2808 = vmatprep.subr.mxu0 0.0
  %2809 = vmatpush1.xpose.msra.mxu0 %v2806
  %2810 = vmatprep.subr.mxu0 0.0
  %2811 = vmatpush1.xpose.msra.mxu0 0.0
  %2812 = vmatprep.subr.mxu0 0.0
  %2813 = vmatpush1.xpose.msra.mxu0 0.0
  %2814 = vmatprep.subr.mxu0 0.0
  %2815 = vmatpush1.xpose.msra.mxu0 0.0
  %2816 = vmatprep.subr.mxu0 0.0
  %2817 = vmatpush1.xpose.msra.mxu0 0.0
  %2818 = vmatprep.subr.mxu0 0.0
  %2819 = vmatpush1.xpose.msra.mxu0 0.0
  %2820 = vmatprep.subr.mxu0 0.0
  %2821 = vmatpush1.xpose.msra.mxu0 0.0
  %2822 = vmatprep.subr.mxu0 0.0
  %2823 = vmatpush1.xpose.msra.mxu0 0.0
  %2824 = vmatprep.subr.mxu0 0.0
  %2825 = vmatpush1.xpose.msra.mxu0 0.0
  %2826 = vmatprep.subr.mxu0 0.0
  %2827 = vmatpush1.xpose.msra.mxu0 0.0
  %2828 = vmatprep.subr.mxu0 0.0
  %2829 = vmatpush1.xpose.msra.mxu0 0.0
  %2830 = vmatprep.subr.mxu0 0.0
  %2831 = vmatpush1.xpose.msra.mxu0 0.0
  %2832 = vmatprep.subr.mxu0 0.0
  %2833 = vmatpush1.xpose.msra.mxu0 0.0
  %2834 = vmatprep.subr.mxu0 0.0
  %2835 = vmatpush1.xpose.msra.mxu0 0.0
  %2836 = vmatprep.subr.mxu0 0.0
  %2837 = vmatpush1.xpose.msra.mxu0 0.0
  %2838 = vmatprep.subr.mxu0 0.0
  %2839 = vmatpush1.xpose.msra.mxu0 0.0
  %2840 = vmatprep.subr.mxu0 0.0
  %2841 = vmatpush1.xpose.msra.mxu0 0.0
  %2842 = vmatprep.subr.mxu0 0.0
  %2843 = vmatpush1.xpose.msra.mxu0 0.0
  %2844 = vmatprep.subr.mxu0 0.0
  %2845 = vmatpush1.xpose.msra.mxu0 0.0
  %2846 = vmatprep.subr.mxu0 0.0
  %2847 = vmatpush1.xpose.msra.mxu0 0.0
  %2848 = vmatprep.subr.mxu0 0.0
  %2849 = vmatpush1.xpose.msra.mxu0 0.0
  %2850 = vmatprep.subr.mxu0 0.0
  %2851 = vmatpush1.xpose.msra.mxu0 0.0
  %2852 = vmatprep.subr.mxu0 0.0
  %2853 = vmatpush1.xpose.msra.mxu0 0.0
  %2854 = vmatprep.subr.mxu0 0.0
  %2855 = vmatpush1.xpose.msra.mxu0 0.0
  %2856 = vmatprep.subr.mxu0 0.0
  %2857 = vmatpush1.xpose.msra.mxu0 0.0
  %2858 = vmatprep.subr.mxu0 0.0
  %2859 = vmatpush1.xpose.msra.mxu0 0.0
  %2860 = vmatprep.subr.mxu0 0.0
  %2861 = vmatpush1.xpose.msra.mxu0 0.0
  %2862 = vmatprep.subr.mxu0 0.0
  %2863 = vmatpush1.xpose.msra.mxu0 0.0
  %2864 = vmatprep.subr.mxu0 0.0
  %2865 = vmatpush1.xpose.msra.mxu0 0.0
  %2866 = vmatprep.subr.mxu0 0.0
  %2867 = vmatpush1.xpose.msra.mxu0 0.0
  %2868 = vmatprep.subr.mxu0 0.0
  %2869 = vmatpush1.xpose.msra.mxu0 0.0
  %2870 = vmatprep.subr.mxu0 0.0
  %2871 = vmatpush1.xpose.msra.mxu0 0.0
  %2872 = vmatprep.mubr.f32.mxu0 0.0
  %2873 = vmatmul.mubr.f32.gmra.mrb[0].mxu0 %v2807
  %v2874 = vpop.f32.mrb[0].mxu0
  %v2875 = vadd.f32 0.0, %v2874
  %v2876 = vpop.f32.mrb[0].mxu0
  %2877 = vdwg.mxu0
  %v2878 = vld [vmem:[#allocation2] sm:$0x1]
  %2880 = vset.pattern.permute.xlu0 0
  %2881 = vperm.xlu0 %2880, %v2878
  %v2882 = vpop.permute.xlu0 %2881
  %v2884 = vlaneseq
  %v2885 = vshrl.u32 %v2884, 7
  %v2886 = vsub.s32 0, %v2885
  %v2887 = vrot.slane %v2882, %v2886
  %v2888 = vadd.f32 %v2875, %v2887
  %vm2889 = vcmask 57344
  %2890 = vst.msk [vmem:[%s15] sm:$0x1] %vm2889, %v2888
  // Predicated region
  $region62: #{qm9_forward.1} parent=0 // pred_check
    _
  $region63: #{qm9_forward.1} parent=0 // pred_check_branch
    %2892 = sbr.rel (0) target = $region65
  $region64: #{qm9_forward.1} parent=0 // pred_region
    _
  $region65: #{qm9_forward.1} parent=0 // pred_fallthru
    _
  // Predicated region
  $region66: #{qm9_forward.1} parent=0 // pred_check
    _
  $region67: #{qm9_forward.1} parent=0 // pred_check_branch
    %2894 = sbr.rel (0) target = $region69
  $region68: #{qm9_forward.1} parent=0 // pred_region
    _
  $region69: #{qm9_forward.1} parent=0 // pred_fallthru
    _

</llo_original>
